<compile_context>
chip_gen: v5e
topology: v5e:2x2
jax: 0.10.0
libtpu: 0.0.40
codegen_flags: <defaults>
</compile_context>

<pallas_src>
import functools

import jax
import jax.numpy as jnp
from jax.experimental import pallas as pl
from jax.experimental.pallas import tpu as pltpu  # noqa: F401  (TPU backend)

LANE = 128


def _round_up(x, m):
    return (x + m - 1) // m * m


def _pad2(x, rows, cols):
    pr, pc = rows - x.shape[0], cols - x.shape[1]
    if pr == 0 and pc == 0:
        return x
    return jnp.pad(x, ((0, pr), (0, pc)))


def _full_spec(shape):
    ndim = len(shape)
    return pl.BlockSpec(shape, lambda *_: (0,) * ndim)


def _fused_gcn_kernel(a_ref, x_ref, w1_ref, w2_ref, w3_ref, b_ref, o_ref, *, hp, op):
    """a_ref: [2,N,N] bf16; x_ref: [3,N,F] bf16; w*_ref bf16; b_ref [3,bw] f32."""
    f32 = jnp.float32
    bf16 = jnp.bfloat16

    # ---- layer 1: per-branch feature inputs; ReLU after propagation.
    h0 = jnp.dot(x_ref[0], w1_ref[:, 0:hp],
                 preferred_element_type=f32) + b_ref[0:1, 0:hp]
    h1 = jnp.dot(x_ref[1], w1_ref[:, hp:2 * hp],
                 preferred_element_type=f32) + b_ref[0:1, hp:2 * hp]
    h2 = jnp.dot(x_ref[2], w1_ref[:, 2 * hp:3 * hp],
                 preferred_element_type=f32) + b_ref[0:1, 2 * hp:3 * hp]
    x = (jnp.maximum(h0, 0.0)
         + jnp.maximum(jnp.dot(a_ref[0], h1.astype(bf16),
                               preferred_element_type=f32), 0.0)
         + jnp.maximum(jnp.dot(a_ref[1], h2.astype(bf16),
                               preferred_element_type=f32), 0.0))

    # ---- layer 2: shared input -> one wide linear matmul; lane-aligned slices.
    hall = jnp.dot(x.astype(bf16), w2_ref[...],
                   preferred_element_type=f32) + b_ref[1:2, 0:3 * hp]
    x = (jnp.maximum(hall[:, 0:hp], 0.0)
         + jnp.maximum(jnp.dot(a_ref[0], hall[:, hp:2 * hp].astype(bf16),
                               preferred_element_type=f32), 0.0)
         + jnp.maximum(jnp.dot(a_ref[1], hall[:, 2 * hp:3 * hp].astype(bf16),
                               preferred_element_type=f32), 0.0))

    # ---- layer 3 (node head, no activation): wide linear + direct propagations.
    hall = jnp.dot(x.astype(bf16), w3_ref[...],
                   preferred_element_type=f32) + b_ref[2:3, 0:3 * op]
    out = (hall[:, 0:op]
           + jnp.dot(a_ref[0], hall[:, op:2 * op].astype(bf16),
                     preferred_element_type=f32)
           + jnp.dot(a_ref[1], hall[:, 2 * op:3 * op].astype(bf16),
                     preferred_element_type=f32))
    o_ref[...] = out.astype(o_ref.dtype)


def init_linear(key, in_dim, out_dim):
    """PyTorch-style nn.Linear init; weight returned as [in_dim, out_dim]."""
    kw, kb = jax.random.split(key)
    bound = 1.0 / jnp.sqrt(jnp.float32(in_dim))
    w = jax.random.uniform(kw, (in_dim, out_dim), jnp.float32, -bound, bound)
    b = jax.random.uniform(kb, (1, out_dim), jnp.float32, -bound, bound)
    return w, b


def two_order_ppr_gcn_forward(params, one_adj, two_adj, x_orig, x_one, x_two):
    """Node-classification branch (query_edges is None). Single fused kernel."""
    n, feat = x_orig.shape
    hid = params["lin1"][0].shape[1]
    out_dim = params["lin3_node"][0].shape[1]
    hp = _round_up(hid, LANE)
    op = _round_up(out_dim, LANE)
    bw = 3 * max(hp, op)
    bf16 = jnp.bfloat16

    # Packed bf16 operands (fewer DMAs). Contraction dims (feat) left unpadded:
    # full-array blocks are exempt from the (8,128) divisibility rule.
    x_stack = jnp.stack([x_orig, x_one, x_two], axis=0).astype(bf16)   # [3, N, F]
    a_stack = jnp.stack([one_adj, two_adj], axis=0).astype(bf16)       # [2, N, N]

    def pad_w(p, rin, rout):
        w, b = p
        return _pad2(w, rin, rout).astype(bf16), _pad2(b, 1, rout)

    w10, b10 = pad_w(params["lin1"],   feat, hp)
    w11, b11 = pad_w(params["lin1_1"], feat, hp)
    w12, b12 = pad_w(params["lin1_2"], feat, hp)
    w20, b20 = pad_w(params["lin2"],   hp, hp)
    w21, b21 = pad_w(params["lin2_1"], hp, hp)
    w22, b22 = pad_w(params["lin2_2"], hp, hp)
    w30, b30 = pad_w(params["lin3_node"],   hp, op)
    w31, b31 = pad_w(params["lin3_1_node"], hp, op)
    w32, b32 = pad_w(params["lin3_2_node"], hp, op)

    w1c = jnp.concatenate([w10, w11, w12], axis=1)                     # [F,  3*hp] bf16
    w2c = jnp.concatenate([w20, w21, w22], axis=1)                     # [hp, 3*hp] bf16
    w3c = jnp.concatenate([w30, w31, w32], axis=1)                     # [hp, 3*op] bf16
    b_all = jnp.concatenate([
        _pad2(jnp.concatenate([b10, b11, b12], axis=1), 1, bw),
        _pad2(jnp.concatenate([b20, b21, b22], axis=1), 1, bw),
        _pad2(jnp.concatenate([b30, b31, b32], axis=1), 1, bw),
    ], axis=0)                                                         # [3, bw] f32

    args = (a_stack, x_stack, w1c, w2c, w3c, b_all)

    flops = 2 * n * (3 * feat * hp + 2 * n * hp        # layer 1
                     + hp * 3 * hp + 2 * n * hp        # layer 2
                     + hp * 3 * op + 2 * n * op)       # layer 3
    bytes_accessed = sum(int(a.size) * a.dtype.itemsize for a in args) + n * op * 4
    cost = pl.CostEstimate(flops=int(flops), transcendentals=0,
                           bytes_accessed=int(bytes_accessed))

    kernel = functools.partial(_fused_gcn_kernel, hp=hp, op=op)
    out_pad = pl.pallas_call(
        kernel,
        out_shape=jax.ShapeDtypeStruct((n, op), jnp.float32),
        grid=(),
        in_specs=[_full_spec(a.shape) for a in args],
        out_specs=_full_spec((n, op)),
        cost_estimate=cost,
    )(*args)
    return out_pad[:, :out_dim]


def reference_forward_f32(params, a1, a2, xo, x1, x2):
    def lin(p, x):
        w, b = p
        return x @ w + b
    r = jax.nn.relu
    x = (r(lin(params["lin1"], xo))
         + r(a1 @ lin(params["lin1_1"], x1))
         + r(a2 @ lin(params["lin1_2"], x2)))
    x = (r(lin(params["lin2"], x))
         + r(a1 @ lin(params["lin2_1"], x))
         + r(a2 @ lin(params["lin2_2"], x)))
    return (lin(params["lin3_node"], x)
            + a1 @ lin(params["lin3_1_node"], x)
            + a2 @ lin(params["lin3_2_node"], x))


def reference_forward_bf16(params, a1, a2, xo, x1, x2):
    """Mirrors the kernel's numerics: bf16 matmul operands, f32 accumulation."""
    bf16, f32 = jnp.bfloat16, jnp.float32

    def lin(p, x):
        w, b = p
        return jnp.dot(x.astype(bf16), w.astype(bf16),
                       preferred_element_type=f32) + b

    def prop(a, h):
        return jnp.dot(a.astype(bf16), h.astype(bf16),
                       preferred_element_type=f32)

    r = jax.nn.relu
    x = (r(lin(params["lin1"], xo))
         + r(prop(a1, lin(params["lin1_1"], x1)))
         + r(prop(a2, lin(params["lin1_2"], x2))))
    x = (r(lin(params["lin2"], x))
         + r(prop(a1, lin(params["lin2_1"], x)))
         + r(prop(a2, lin(params["lin2_2"], x))))
    return (lin(params["lin3_node"], x)
            + prop(a1, lin(params["lin3_1_node"], x))
            + prop(a2, lin(params["lin3_2_node"], x)))


if __name__ == "__main__":
    N, FEAT, HID, OUT = 128, 32, 32, 16

    key = jax.random.PRNGKey(0)
    keys = jax.random.split(key, 16)

    params = {
        "lin1":        init_linear(keys[0], FEAT, HID),
        "lin1_1":      init_linear(keys[1], FEAT, HID),
        "lin1_2":      init_linear(keys[2], FEAT, HID),
        "lin2":        init_linear(keys[3], HID, HID),
        "lin2_1":      init_linear(keys[4], HID, HID),
        "lin2_2":      init_linear(keys[5], HID, HID),
        "lin3_node":   init_linear(keys[6], HID, OUT),
        "lin3_1_node": init_linear(keys[7], HID, OUT),
        "lin3_2_node": init_linear(keys[8], HID, OUT),
    }

    # Dense synthetic PPR-approximation adjacencies (row-normalized, non-negative).
    a1_raw = jax.random.uniform(keys[9], (N, N), jnp.float32)
    a2_raw = jax.random.uniform(keys[10], (N, N), jnp.float32)
    one_adj = a1_raw / jnp.sum(a1_raw, axis=1, keepdims=True)
    two_adj = a2_raw / jnp.sum(a2_raw, axis=1, keepdims=True)

    original_feature = jax.random.normal(keys[11], (N, FEAT), jnp.float32)
    one_processed_feature = jax.random.normal(keys[12], (N, FEAT), jnp.float32)
    two_processed_feature = jax.random.normal(keys[13], (N, FEAT), jnp.float32)

    out = two_order_ppr_gcn_forward(params, one_adj, two_adj,
                                    original_feature,
                                    one_processed_feature,
                                    two_processed_feature)
    out = jax.block_until_ready(out)

    ref_bf16 = reference_forward_bf16(params, one_adj, two_adj,
                                      original_feature,
                                      one_processed_feature,
                                      two_processed_feature)
    ref_f32 = reference_forward_f32(params, one_adj, two_adj,
                                    original_feature,
                                    one_processed_feature,
                                    two_processed_feature)

    assert out.shape == (N, OUT)
    assert jnp.allclose(out, ref_bf16, atol=1e-2, rtol=1e-2), "mismatch vs bf16 reference"
    assert jnp.allclose(out, ref_f32, atol=1e-1, rtol=1e-1), "mismatch vs f32 reference"
    print("KERNEL_OK")
</pallas_src>

<mosaic_0001>
module attributes {stable_mosaic.version = 11 : i64} {
  func.func @_fused_gcn_kernel(%arg0: memref<2x128x128xbf16, #tpu.memory_space<vmem>>, %arg1: memref<3x128x32xbf16, #tpu.memory_space<vmem>>, %arg2: memref<32x384xbf16, #tpu.memory_space<vmem>>, %arg3: memref<128x384xbf16, #tpu.memory_space<vmem>>, %arg4: memref<128x384xbf16, #tpu.memory_space<vmem>>, %arg5: memref<3x384xf32, #tpu.memory_space<vmem>>, %arg6: memref<128x128xf32, #tpu.memory_space<vmem>>) attributes {dimension_semantics = [], scalar_prefetch = 0 : i64, scratch_operands = 0 : i64, tpu.core_type = #tpu.core_type<tc>} {
    %c0 = arith.constant 0 : index
    %c0_0 = arith.constant 0 : index
    %c0_1 = arith.constant 0 : index
    %0 = vector.load %arg1[%c0, %c0_0, %c0_1] : memref<3x128x32xbf16, #tpu.memory_space<vmem>>, vector<1x128x32xbf16>
    %1 = vector.shape_cast %0 : vector<1x128x32xbf16> to vector<128x32xbf16>
    %c0_2 = arith.constant 0 : index
    %c0_3 = arith.constant 0 : index
    %2 = vector.load %arg2[%c0_2, %c0_3] : memref<32x384xbf16, #tpu.memory_space<vmem>>, vector<32x128xbf16>
    %cst = arith.constant dense<0.000000e+00> : vector<128x128xf32>
    %3 = tpu.matmul %1, %2, %cst {dimension_numbers = #tpu.dot_dimension_numbers<[1], [0], [0], [1], [0, 0, 1, 1], [], []>} : vector<128x32xbf16>, vector<32x128xbf16>, vector<128x128xf32> -> vector<128x128xf32>
    %c0_4 = arith.constant 0 : index
    %c0_5 = arith.constant 0 : index
    %4 = vector.load %arg5[%c0_4, %c0_5] : memref<3x384xf32, #tpu.memory_space<vmem>>, vector<1x128xf32>
    %5 = vector.broadcast %4 : vector<1x128xf32> to vector<128x128xf32>
    %6 = arith.addf %3, %5 : vector<128x128xf32>
    %c1 = arith.constant 1 : index
    %c0_6 = arith.constant 0 : index
    %c0_7 = arith.constant 0 : index
    %7 = vector.load %arg1[%c1, %c0_6, %c0_7] : memref<3x128x32xbf16, #tpu.memory_space<vmem>>, vector<1x128x32xbf16>
    %8 = vector.shape_cast %7 : vector<1x128x32xbf16> to vector<128x32xbf16>
    %c0_8 = arith.constant 0 : index
    %c128 = arith.constant 128 : index
    %9 = vector.load %arg2[%c0_8, %c128] : memref<32x384xbf16, #tpu.memory_space<vmem>>, vector<32x128xbf16>
    %cst_9 = arith.constant dense<0.000000e+00> : vector<128x128xf32>
    %10 = tpu.matmul %8, %9, %cst_9 {dimension_numbers = #tpu.dot_dimension_numbers<[1], [0], [0], [1], [0, 0, 1, 1], [], []>} : vector<128x32xbf16>, vector<32x128xbf16>, vector<128x128xf32> -> vector<128x128xf32>
    %c0_10 = arith.constant 0 : index
    %c128_11 = arith.constant 128 : index
    %11 = vector.load %arg5[%c0_10, %c128_11] : memref<3x384xf32, #tpu.memory_space<vmem>>, vector<1x128xf32>
    %12 = vector.broadcast %11 : vector<1x128xf32> to vector<128x128xf32>
    %13 = arith.addf %10, %12 : vector<128x128xf32>
    %c2 = arith.constant 2 : index
    %c0_12 = arith.constant 0 : index
    %c0_13 = arith.constant 0 : index
    %14 = vector.load %arg1[%c2, %c0_12, %c0_13] : memref<3x128x32xbf16, #tpu.memory_space<vmem>>, vector<1x128x32xbf16>
    %15 = vector.shape_cast %14 : vector<1x128x32xbf16> to vector<128x32xbf16>
    %c0_14 = arith.constant 0 : index
    %c256 = arith.constant 256 : index
    %16 = vector.load %arg2[%c0_14, %c256] : memref<32x384xbf16, #tpu.memory_space<vmem>>, vector<32x128xbf16>
    %cst_15 = arith.constant dense<0.000000e+00> : vector<128x128xf32>
    %17 = tpu.matmul %15, %16, %cst_15 {dimension_numbers = #tpu.dot_dimension_numbers<[1], [0], [0], [1], [0, 0, 1, 1], [], []>} : vector<128x32xbf16>, vector<32x128xbf16>, vector<128x128xf32> -> vector<128x128xf32>
    %c0_16 = arith.constant 0 : index
    %c256_17 = arith.constant 256 : index
    %18 = vector.load %arg5[%c0_16, %c256_17] : memref<3x384xf32, #tpu.memory_space<vmem>>, vector<1x128xf32>
    %19 = vector.broadcast %18 : vector<1x128xf32> to vector<128x128xf32>
    %20 = arith.addf %17, %19 : vector<128x128xf32>
    %cst_18 = arith.constant 0.000000e+00 : f32
    %21 = vector.broadcast %cst_18 : f32 to vector<128x128xf32>
    %22 = arith.maximumf %6, %21 : vector<128x128xf32>
    %c0_19 = arith.constant 0 : index
    %c0_20 = arith.constant 0 : index
    %c0_21 = arith.constant 0 : index
    %23 = vector.load %arg0[%c0_19, %c0_20, %c0_21] : memref<2x128x128xbf16, #tpu.memory_space<vmem>>, vector<1x128x128xbf16>
    %24 = vector.shape_cast %23 : vector<1x128x128xbf16> to vector<128x128xbf16>
    %25 = arith.truncf %13 : vector<128x128xf32> to vector<128x128xbf16>
    %cst_22 = arith.constant dense<0.000000e+00> : vector<128x128xf32>
    %26 = tpu.matmul %24, %25, %cst_22 {dimension_numbers = #tpu.dot_dimension_numbers<[1], [0], [0], [1], [0, 0, 1, 1], [], []>} : vector<128x128xbf16>, vector<128x128xbf16>, vector<128x128xf32> -> vector<128x128xf32>
    %cst_23 = arith.constant 0.000000e+00 : f32
    %27 = vector.broadcast %cst_23 : f32 to vector<128x128xf32>
    %28 = arith.maximumf %26, %27 : vector<128x128xf32>
    %29 = arith.addf %22, %28 : vector<128x128xf32>
    %c1_24 = arith.constant 1 : index
    %c0_25 = arith.constant 0 : index
    %c0_26 = arith.constant 0 : index
    %30 = vector.load %arg0[%c1_24, %c0_25, %c0_26] : memref<2x128x128xbf16, #tpu.memory_space<vmem>>, vector<1x128x128xbf16>
    %31 = vector.shape_cast %30 : vector<1x128x128xbf16> to vector<128x128xbf16>
    %32 = arith.truncf %20 : vector<128x128xf32> to vector<128x128xbf16>
    %cst_27 = arith.constant dense<0.000000e+00> : vector<128x128xf32>
    %33 = tpu.matmul %31, %32, %cst_27 {dimension_numbers = #tpu.dot_dimension_numbers<[1], [0], [0], [1], [0, 0, 1, 1], [], []>} : vector<128x128xbf16>, vector<128x128xbf16>, vector<128x128xf32> -> vector<128x128xf32>
    %cst_28 = arith.constant 0.000000e+00 : f32
    %34 = vector.broadcast %cst_28 : f32 to vector<128x128xf32>
    %35 = arith.maximumf %33, %34 : vector<128x128xf32>
    %36 = arith.addf %29, %35 : vector<128x128xf32>
    %37 = arith.truncf %36 : vector<128x128xf32> to vector<128x128xbf16>
    %c0_29 = arith.constant 0 : index
    %c0_30 = arith.constant 0 : index
    %38 = vector.load %arg3[%c0_29, %c0_30] : memref<128x384xbf16, #tpu.memory_space<vmem>>, vector<128x384xbf16>
    %cst_31 = arith.constant dense<0.000000e+00> : vector<128x384xf32>
    %39 = tpu.matmul %37, %38, %cst_31 {dimension_numbers = #tpu.dot_dimension_numbers<[1], [0], [0], [1], [0, 0, 1, 1], [], []>} : vector<128x128xbf16>, vector<128x384xbf16>, vector<128x384xf32> -> vector<128x384xf32>
    %c1_32 = arith.constant 1 : index
    %c0_33 = arith.constant 0 : index
    %40 = vector.load %arg5[%c1_32, %c0_33] : memref<3x384xf32, #tpu.memory_space<vmem>>, vector<1x384xf32>
    %41 = vector.broadcast %40 : vector<1x384xf32> to vector<128x384xf32>
    %42 = arith.addf %39, %41 : vector<128x384xf32>
    %43 = vector.extract_strided_slice %42 {offsets = [0, 0], sizes = [128, 128], strides = [1, 1]} : vector<128x384xf32> to vector<128x128xf32>
    %cst_34 = arith.constant 0.000000e+00 : f32
    %44 = vector.broadcast %cst_34 : f32 to vector<128x128xf32>
    %45 = arith.maximumf %43, %44 : vector<128x128xf32>
    %c0_35 = arith.constant 0 : index
    %c0_36 = arith.constant 0 : index
    %c0_37 = arith.constant 0 : index
    %46 = vector.load %arg0[%c0_35, %c0_36, %c0_37] : memref<2x128x128xbf16, #tpu.memory_space<vmem>>, vector<1x128x128xbf16>
    %47 = vector.shape_cast %46 : vector<1x128x128xbf16> to vector<128x128xbf16>
    %48 = vector.extract_strided_slice %42 {offsets = [0, 128], sizes = [128, 128], strides = [1, 1]} : vector<128x384xf32> to vector<128x128xf32>
    %49 = arith.truncf %48 : vector<128x128xf32> to vector<128x128xbf16>
    %cst_38 = arith.constant dense<0.000000e+00> : vector<128x128xf32>
    %50 = tpu.matmul %47, %49, %cst_38 {dimension_numbers = #tpu.dot_dimension_numbers<[1], [0], [0], [1], [0, 0, 1, 1], [], []>} : vector<128x128xbf16>, vector<128x128xbf16>, vector<128x128xf32> -> vector<128x128xf32>
    %cst_39 = arith.constant 0.000000e+00 : f32
    %51 = vector.broadcast %cst_39 : f32 to vector<128x128xf32>
    %52 = arith.maximumf %50, %51 : vector<128x128xf32>
    %53 = arith.addf %45, %52 : vector<128x128xf32>
    %c1_40 = arith.constant 1 : index
    %c0_41 = arith.constant 0 : index
    %c0_42 = arith.constant 0 : index
    %54 = vector.load %arg0[%c1_40, %c0_41, %c0_42] : memref<2x128x128xbf16, #tpu.memory_space<vmem>>, vector<1x128x128xbf16>
    %55 = vector.shape_cast %54 : vector<1x128x128xbf16> to vector<128x128xbf16>
    %56 = vector.extract_strided_slice %42 {offsets = [0, 256], sizes = [128, 128], strides = [1, 1]} : vector<128x384xf32> to vector<128x128xf32>
    %57 = arith.truncf %56 : vector<128x128xf32> to vector<128x128xbf16>
    %cst_43 = arith.constant dense<0.000000e+00> : vector<128x128xf32>
    %58 = tpu.matmul %55, %57, %cst_43 {dimension_numbers = #tpu.dot_dimension_numbers<[1], [0], [0], [1], [0, 0, 1, 1], [], []>} : vector<128x128xbf16>, vector<128x128xbf16>, vector<128x128xf32> -> vector<128x128xf32>
    %cst_44 = arith.constant 0.000000e+00 : f32
    %59 = vector.broadcast %cst_44 : f32 to vector<128x128xf32>
    %60 = arith.maximumf %58, %59 : vector<128x128xf32>
    %61 = arith.addf %53, %60 : vector<128x128xf32>
    %62 = arith.truncf %61 : vector<128x128xf32> to vector<128x128xbf16>
    %c0_45 = arith.constant 0 : index
    %c0_46 = arith.constant 0 : index
    %63 = vector.load %arg4[%c0_45, %c0_46] : memref<128x384xbf16, #tpu.memory_space<vmem>>, vector<128x384xbf16>
    %cst_47 = arith.constant dense<0.000000e+00> : vector<128x384xf32>
    %64 = tpu.matmul %62, %63, %cst_47 {dimension_numbers = #tpu.dot_dimension_numbers<[1], [0], [0], [1], [0, 0, 1, 1], [], []>} : vector<128x128xbf16>, vector<128x384xbf16>, vector<128x384xf32> -> vector<128x384xf32>
    %c2_48 = arith.constant 2 : index
    %c0_49 = arith.constant 0 : index
    %65 = vector.load %arg5[%c2_48, %c0_49] : memref<3x384xf32, #tpu.memory_space<vmem>>, vector<1x384xf32>
    %66 = vector.broadcast %65 : vector<1x384xf32> to vector<128x384xf32>
    %67 = arith.addf %64, %66 : vector<128x384xf32>
    %68 = vector.extract_strided_slice %67 {offsets = [0, 0], sizes = [128, 128], strides = [1, 1]} : vector<128x384xf32> to vector<128x128xf32>
    %c0_50 = arith.constant 0 : index
    %c0_51 = arith.constant 0 : index
    %c0_52 = arith.constant 0 : index
    %69 = vector.load %arg0[%c0_50, %c0_51, %c0_52] : memref<2x128x128xbf16, #tpu.memory_space<vmem>>, vector<1x128x128xbf16>
    %70 = vector.shape_cast %69 : vector<1x128x128xbf16> to vector<128x128xbf16>
    %71 = vector.extract_strided_slice %67 {offsets = [0, 128], sizes = [128, 128], strides = [1, 1]} : vector<128x384xf32> to vector<128x128xf32>
    %72 = arith.truncf %71 : vector<128x128xf32> to vector<128x128xbf16>
    %cst_53 = arith.constant dense<0.000000e+00> : vector<128x128xf32>
    %73 = tpu.matmul %70, %72, %cst_53 {dimension_numbers = #tpu.dot_dimension_numbers<[1], [0], [0], [1], [0, 0, 1, 1], [], []>} : vector<128x128xbf16>, vector<128x128xbf16>, vector<128x128xf32> -> vector<128x128xf32>
    %74 = arith.addf %68, %73 : vector<128x128xf32>
    %c1_54 = arith.constant 1 : index
    %c0_55 = arith.constant 0 : index
    %c0_56 = arith.constant 0 : index
    %75 = vector.load %arg0[%c1_54, %c0_55, %c0_56] : memref<2x128x128xbf16, #tpu.memory_space<vmem>>, vector<1x128x128xbf16>
    %76 = vector.shape_cast %75 : vector<1x128x128xbf16> to vector<128x128xbf16>
    %77 = vector.extract_strided_slice %67 {offsets = [0, 256], sizes = [128, 128], strides = [1, 1]} : vector<128x384xf32> to vector<128x128xf32>
    %78 = arith.truncf %77 : vector<128x128xf32> to vector<128x128xbf16>
    %cst_57 = arith.constant dense<0.000000e+00> : vector<128x128xf32>
    %79 = tpu.matmul %76, %78, %cst_57 {dimension_numbers = #tpu.dot_dimension_numbers<[1], [0], [0], [1], [0, 0, 1, 1], [], []>} : vector<128x128xbf16>, vector<128x128xbf16>, vector<128x128xf32> -> vector<128x128xf32>
    %80 = arith.addf %74, %79 : vector<128x128xf32>
    %c0_58 = arith.constant 0 : index
    %c0_59 = arith.constant 0 : index
    %81 = vector.load %arg6[%c0_58, %c0_59] : memref<128x128xf32, #tpu.memory_space<vmem>>, vector<128x128xf32>
    tpu.vector_store %arg6[%c0_58, %c0_59], %80 {strides = array<i32>} : memref<128x128xf32, #tpu.memory_space<vmem>>, vector<128x128xf32>,
    return
  }
}

</mosaic_0001>

<llo_original>
// kernel: tpu_custom_call.1
$region0: #{tpu_custom_call.1}
  #allocation0 [shape = 'u32[]', space=smem, size = 0x4, offset = 0x4, fixed_abs, tag = 'smem constant byte address 0x4 - core index']
  #allocation1 [shape = 'u32[72,128]{1,0:T(1,128)}', space=vmem, size = 0x9000, scoped, tag = 'internal scratch']
  %s0 = inlined_call_operand.hbm [shape: bf16[2,128,128], index: 0, kind: input, shape index: {}]
  %s1 = inlined_call_operand.vmem [shape: bf16[3,128,32], index: 1, kind: input, shape index: {}]
  %s2 = inlined_call_operand.vmem [shape: bf16[32,384], index: 2, kind: input, shape index: {}]
  %s3 = inlined_call_operand.vmem [shape: bf16[128,384], index: 3, kind: input, shape index: {}]
  %s4 = inlined_call_operand.hbm [shape: bf16[128,384], index: 4, kind: input, shape index: {}]
  %s5 = inlined_call_operand.hbm [shape: f32[3,384], index: 5, kind: input, shape index: {}]
  %s6 = inlined_call_operand.hbm [shape: f32[128,128], index: 6, kind: output, shape index: {}]
  %s7 = sld [smem:[#allocation0]]
  $region46: #{tpu_custom_call.1} parent=0
    _
  %s9 = ssub.s32 1, %s7
  %s10 = scalar_select 0, %s9, %s7
  $region1: #{tpu_custom_call.1} parent=0
    #allocation2 [shape = 'u8[65536]{0}', space=vmem, size = 0x10000, scoped, tag = 'input window, operand 0, single buffered']
    #allocation3 [shape = 's32[1]{0}', space=sflag, size = 0x4, scoped, tag = 'scoped memory for tpu_custom_call.1']
    #allocation4 [shape = 's32[1]{0}', space=sflag, size = 0x4, scoped, tag = 'scoped memory for tpu_custom_call.1']
    #allocation5 [shape = 'u8[98304]{0}', space=vmem, size = 0x18000, scoped, tag = 'input window, operand 4, single buffered']
    #allocation6 [shape = 's32[1]{0}', space=sflag, size = 0x4, scoped, tag = 'scoped memory for tpu_custom_call.1']
    #allocation7 [shape = 'u8[6144]{0}', space=vmem, size = 0x1800, scoped, tag = 'input window, operand 5, single buffered']
    #allocation8 [shape = 'u8[65536]{0}', space=vmem, size = 0x10000, scoped, tag = 'output window, operand 0, single buffered']
    %11 = vsyncpa [#allocation3], 0
    %12 = vsyncpa [#allocation6], 0
    %13 = vsyncpa [#allocation4], 0
    // Predicated region
    $region2: #{tpu_custom_call.1} parent=1 // pred_check
      _
    $region3: #{tpu_custom_call.1} parent=1 // pred_check_branch
      %15 = sbr.rel (0) target = $region5
    $region4: #{tpu_custom_call.1} parent=1 // pred_region
      %17 = vsyncadd [#allocation3], 0
      %s18 = sshll.u32 %s0, 4
      %s19 = int_to_ptr.hbm [resolvable:$true] %s18
      %s20 = sshll.u32 [#allocation2], 4
      %s21 = int_to_ptr.vmem [resolvable:$true] %s20
      %26 = dma.hbm_to_vmem [thread:$0]  %s19, 2048, %s21, [#allocation3], 64, 64, 4
    $region5: #{tpu_custom_call.1} parent=1 // pred_fallthru
      _
    // Predicated region
    $region6: #{tpu_custom_call.1} parent=1 // pred_check
      _
    $region7: #{tpu_custom_call.1} parent=1 // pred_check_branch
      %28 = sbr.rel (0) target = $region9
    $region8: #{tpu_custom_call.1} parent=1 // pred_region
      _
    $region9: #{tpu_custom_call.1} parent=1 // pred_fallthru
      _
    // Predicated region
    $region10: #{tpu_custom_call.1} parent=1 // pred_check
      _
    $region11: #{tpu_custom_call.1} parent=1 // pred_check_branch
      %30 = sbr.rel (0) target = $region13
    $region12: #{tpu_custom_call.1} parent=1 // pred_region
      _
    $region13: #{tpu_custom_call.1} parent=1 // pred_fallthru
      _
    // Predicated region
    $region14: #{tpu_custom_call.1} parent=1 // pred_check
      _
    $region15: #{tpu_custom_call.1} parent=1 // pred_check_branch
      %32 = sbr.rel (0) target = $region17
    $region16: #{tpu_custom_call.1} parent=1 // pred_region
      _
    $region17: #{tpu_custom_call.1} parent=1 // pred_fallthru
      _
    // Predicated region
    $region18: #{tpu_custom_call.1} parent=1 // pred_check
      _
    $region19: #{tpu_custom_call.1} parent=1 // pred_check_branch
      %34 = sbr.rel (0) target = $region21
    $region20: #{tpu_custom_call.1} parent=1 // pred_region
      %36 = vsyncadd [#allocation6], 0
      %s37 = sshll.u32 %s4, 4
      %s38 = int_to_ptr.hbm [resolvable:$true] %s37
      %s39 = sshll.u32 [#allocation5], 4
      %s40 = int_to_ptr.vmem [resolvable:$true] %s39
      %45 = dma.hbm_to_vmem [thread:$0]  %s38, 3072, %s40, [#allocation6], 192, 192, 12
    $region21: #{tpu_custom_call.1} parent=1 // pred_fallthru
      _
    // Predicated region
    $region22: #{tpu_custom_call.1} parent=1 // pred_check
      _
    $region23: #{tpu_custom_call.1} parent=1 // pred_check_branch
      %47 = sbr.rel (0) target = $region25
    $region24: #{tpu_custom_call.1} parent=1 // pred_region
      %49 = vsyncadd [#allocation6], 0
      %s51 = sshll.u32 %s5, 4
      %s52 = int_to_ptr.hbm [resolvable:$true] %s51
      %s53 = sshll.u32 [#allocation7], 4
      %s54 = int_to_ptr.vmem [resolvable:$true] %s53
      %56 = dma.hbm_to_vmem [thread:$0]  %s52, 192, %s54, [#allocation6]
    $region25: #{tpu_custom_call.1} parent=1 // pred_fallthru
      _
    // Predicated region
    $region26: #{tpu_custom_call.1} parent=1 // pred_check
      _
    $region27: #{tpu_custom_call.1} parent=1 // pred_check_branch
      %58 = sbr.rel (0) target = $region29
    $region28: #{tpu_custom_call.1} parent=1 // pred_region
      %60 = dma.done [#allocation3], 2048
    $region29: #{tpu_custom_call.1} parent=1 // pred_fallthru
      _
    // Predicated region
    $region30: #{tpu_custom_call.1} parent=1 // pred_check
      _
    $region31: #{tpu_custom_call.1} parent=1 // pred_check_branch
      %62 = sbr.rel (0) target = $region33
    $region32: #{tpu_custom_call.1} parent=1 // pred_region
      %64 = dma.done [#allocation6], 3072
    $region33: #{tpu_custom_call.1} parent=1 // pred_fallthru
      _
    // Predicated region
    $region34: #{tpu_custom_call.1} parent=1 // pred_check
      _
    $region35: #{tpu_custom_call.1} parent=1 // pred_check_branch
      %66 = sbr.rel (0) target = $region37
    $region36: #{tpu_custom_call.1} parent=1 // pred_region
      %68 = dma.done [#allocation6], 192
    $region37: #{tpu_custom_call.1} parent=1 // pred_fallthru
      _
    %v70 = vld [vmem:[%s1] sm:$0xf]
    %v71 = vld [vmem:[%s1 + $0x4] sm:$0xf]
    %v72 = vld [vmem:[%s1 + $0x8] sm:$0xf]
    %v73 = vld [vmem:[%s1 + $0xc] sm:$0xf]
    %v74 = vld [vmem:[%s1 + $0x10] sm:$0xf]
    %v75 = vld [vmem:[%s1 + $0x14] sm:$0xf]
    %v76 = vld [vmem:[%s1 + $0x18] sm:$0xf]
    %v77 = vld [vmem:[%s1 + $0x1c] sm:$0xf]
    %v78 = vld [vmem:[%s1 + $0x20] sm:$0xf]
    %v79 = vld [vmem:[%s1 + $0x24] sm:$0xf]
    %v80 = vld [vmem:[%s1 + $0x28] sm:$0xf]
    %v81 = vld [vmem:[%s1 + $0x2c] sm:$0xf]
    %v82 = vld [vmem:[%s1 + $0x30] sm:$0xf]
    %v83 = vld [vmem:[%s1 + $0x34] sm:$0xf]
    %v84 = vld [vmem:[%s1 + $0x38] sm:$0xf]
    %v85 = vld [vmem:[%s1 + $0x3c] sm:$0xf]
    %v86 = vld [vmem:[%s2] sm:$0xf]
    %v87 = vld [vmem:[%s2 + $0xc] sm:$0xf]
    %v88 = vld [vmem:[%s2 + $0x18] sm:$0xf]
    %v89 = vld [vmem:[%s2 + $0x24] sm:$0xf]
    %v90 = vld [vmem:[#allocation7] sm:$0x1]
    %v91 = vperm.slane %v90, 0
    %v108 = vunpack.c.l.b16 %v70
    %v109 = vunpack.c.l.b16 %v71
    %v110 = vunpack.c.l.b16 %v72
    %v111 = vunpack.c.l.b16 %v73
    %v112 = vunpack.c.l.b16 %v74
    %v113 = vunpack.c.l.b16 %v75
    %v114 = vunpack.c.l.b16 %v76
    %v115 = vunpack.c.l.b16 %v77
    %v116 = vunpack.c.l.b16 %v78
    %v117 = vunpack.c.l.b16 %v79
    %v118 = vunpack.c.l.b16 %v80
    %v119 = vunpack.c.l.b16 %v81
    %v120 = vunpack.c.l.b16 %v82
    %v121 = vunpack.c.l.b16 %v83
    %v122 = vunpack.c.l.b16 %v84
    %v123 = vunpack.c.l.b16 %v85
    %v124 = vpack.c.b16 %v109, %v108
    %v125 = vpack.c.b16 %v111, %v110
    %v126 = vpack.c.b16 %v113, %v112
    %v127 = vpack.c.b16 %v115, %v114
    %v128 = vpack.c.b16 %v117, %v116
    %v129 = vpack.c.b16 %v119, %v118
    %v130 = vpack.c.b16 %v121, %v120
    %v131 = vpack.c.b16 %v123, %v122
    %v136 = vunpack.c.l.b16 %v86
    %v137 = vunpack.c.l.b16 %v87
    %v138 = vunpack.c.l.b16 %v88
    %v139 = vunpack.c.l.b16 %v89
    %v140 = vpack.c.b16 %v137, %v136
    %v141 = vpack.c.b16 %v139, %v138
    %vm144 = vcmask 261120
    %v146 = vsel %vm144, %v124, 0
    %v149 = vsel %vm144, %v125, 0
    %v152 = vsel %vm144, %v126, 0
    %v155 = vsel %vm144, %v127, 0
    %v158 = vsel %vm144, %v128, 0
    %v161 = vsel %vm144, %v129, 0
    %v164 = vsel %vm144, %v130, 0
    %v167 = vsel %vm144, %v131, 0
    %169 = vmatpush.bf16.msra.mxu0 0
    %170 = vmatpush.bf16.msra.mxu0 0
    %171 = vmatpush.bf16.msra.mxu0 0
    %172 = vmatpush.bf16.msra.mxu0 0
    %173 = vmatpush.bf16.msra.mxu0 0
    %174 = vmatpush.bf16.msra.mxu0 0
    %175 = vmatpush.bf16.msra.mxu0 %v141
    %176 = vmatpush.bf16.msra.mxu0 %v140
    %177 = vmatmul.bf16.gmra.mxu0 %v146
    %v178 = vpop.f32.mrf.mxu0
    %v179 = vadd.f32 %v91, %v178
    %v180 = vpop.f32.mrf.mxu0
    %v181 = vadd.f32 %v91, %v180
    %182 = vmatmul.bf16.gmra.mxu0 %v149
    %v183 = vpop.f32.mrf.mxu0
    %v184 = vadd.f32 %v91, %v183
    %v185 = vpop.f32.mrf.mxu0
    %v186 = vadd.f32 %v91, %v185
    %187 = vmatmul.bf16.gmra.mxu0 %v152
    %v188 = vpop.f32.mrf.mxu0
    %v189 = vadd.f32 %v91, %v188
    %v190 = vpop.f32.mrf.mxu0
    %v191 = vadd.f32 %v91, %v190
    %192 = vmatmul.bf16.gmra.mxu0 %v155
    %v193 = vpop.f32.mrf.mxu0
    %v194 = vadd.f32 %v91, %v193
    %v195 = vpop.f32.mrf.mxu0
    %v196 = vadd.f32 %v91, %v195
    %197 = vmatmul.bf16.gmra.mxu0 %v158
    %v198 = vpop.f32.mrf.mxu0
    %v199 = vadd.f32 %v91, %v198
    %v200 = vpop.f32.mrf.mxu0
    %v201 = vadd.f32 %v91, %v200
    %202 = vmatmul.bf16.gmra.mxu0 %v161
    %v203 = vpop.f32.mrf.mxu0
    %v204 = vadd.f32 %v91, %v203
    %v205 = vpop.f32.mrf.mxu0
    %v206 = vadd.f32 %v91, %v205
    %207 = vmatmul.bf16.gmra.mxu0 %v164
    %v208 = vpop.f32.mrf.mxu0
    %v209 = vadd.f32 %v91, %v208
    %v210 = vpop.f32.mrf.mxu0
    %v211 = vadd.f32 %v91, %v210
    %212 = vmatmul.bf16.gmra.mxu0 %v167
    %v213 = vpop.f32.mrf.mxu0
    %v214 = vadd.f32 %v91, %v213
    %v215 = vpop.f32.mrf.mxu0
    %v216 = vadd.f32 %v91, %v215
    %217 = vdwg.mxu0
    %s218 = scalar_lea.vmem %s1, 64
    %v219 = vld [vmem:[%s218] sm:$0xf]
    %v220 = vld [vmem:[%s218 + $0x4] sm:$0xf]
    %v221 = vld [vmem:[%s218 + $0x8] sm:$0xf]
    %v222 = vld [vmem:[%s218 + $0xc] sm:$0xf]
    %v223 = vld [vmem:[%s218 + $0x10] sm:$0xf]
    %v224 = vld [vmem:[%s218 + $0x14] sm:$0xf]
    %v225 = vld [vmem:[%s218 + $0x18] sm:$0xf]
    %v226 = vld [vmem:[%s218 + $0x1c] sm:$0xf]
    %v227 = vld [vmem:[%s218 + $0x20] sm:$0xf]
    %v228 = vld [vmem:[%s218 + $0x24] sm:$0xf]
    %v229 = vld [vmem:[%s218 + $0x28] sm:$0xf]
    %v230 = vld [vmem:[%s218 + $0x2c] sm:$0xf]
    %v231 = vld [vmem:[%s218 + $0x30] sm:$0xf]
    %v232 = vld [vmem:[%s218 + $0x34] sm:$0xf]
    %v233 = vld [vmem:[%s218 + $0x38] sm:$0xf]
    %v234 = vld [vmem:[%s218 + $0x3c] sm:$0xf]
    %v235 = vld [vmem:[%s2 + $0x4] sm:$0xf]
    %v236 = vld [vmem:[%s2 + $0x10] sm:$0xf]
    %v237 = vld [vmem:[%s2 + $0x1c] sm:$0xf]
    %v238 = vld [vmem:[%s2 + $0x28] sm:$0xf]
    %v239 = vld [vmem:[#allocation7 + $0x4] sm:$0x1]
    %v240 = vperm.slane %v239, 0
    %v257 = vunpack.c.l.b16 %v219
    %v258 = vunpack.c.l.b16 %v220
    %v259 = vunpack.c.l.b16 %v221
    %v260 = vunpack.c.l.b16 %v222
    %v261 = vunpack.c.l.b16 %v223
    %v262 = vunpack.c.l.b16 %v224
    %v263 = vunpack.c.l.b16 %v225
    %v264 = vunpack.c.l.b16 %v226
    %v265 = vunpack.c.l.b16 %v227
    %v266 = vunpack.c.l.b16 %v228
    %v267 = vunpack.c.l.b16 %v229
    %v268 = vunpack.c.l.b16 %v230
    %v269 = vunpack.c.l.b16 %v231
    %v270 = vunpack.c.l.b16 %v232
    %v271 = vunpack.c.l.b16 %v233
    %v272 = vunpack.c.l.b16 %v234
    %v273 = vpack.c.b16 %v258, %v257
    %v274 = vpack.c.b16 %v260, %v259
    %v275 = vpack.c.b16 %v262, %v261
    %v276 = vpack.c.b16 %v264, %v263
    %v277 = vpack.c.b16 %v266, %v265
    %v278 = vpack.c.b16 %v268, %v267
    %v279 = vpack.c.b16 %v270, %v269
    %v280 = vpack.c.b16 %v272, %v271
    %v285 = vunpack.c.l.b16 %v235
    %v286 = vunpack.c.l.b16 %v236
    %v287 = vunpack.c.l.b16 %v237
    %v288 = vunpack.c.l.b16 %v238
    %v289 = vpack.c.b16 %v286, %v285
    %v290 = vpack.c.b16 %v288, %v287
    %v294 = vsel %vm144, %v273, 0
    %v297 = vsel %vm144, %v274, 0
    %v300 = vsel %vm144, %v275, 0
    %v303 = vsel %vm144, %v276, 0
    %v306 = vsel %vm144, %v277, 0
    %v309 = vsel %vm144, %v278, 0
    %v312 = vsel %vm144, %v279, 0
    %v315 = vsel %vm144, %v280, 0
    %317 = vmatpush.bf16.msra.mxu0 0
    %318 = vmatpush.bf16.msra.mxu0 0
    %319 = vmatpush.bf16.msra.mxu0 0
    %320 = vmatpush.bf16.msra.mxu0 0
    %321 = vmatpush.bf16.msra.mxu0 0
    %322 = vmatpush.bf16.msra.mxu0 0
    %323 = vmatpush.bf16.msra.mxu0 %v290
    %324 = vmatpush.bf16.msra.mxu0 %v289
    %325 = vmatmul.bf16.gmra.mxu0 %v294
    %v326 = vpop.f32.mrf.mxu0
    %v327 = vadd.f32 %v240, %v326
    %v328 = vpop.f32.mrf.mxu0
    %v329 = vadd.f32 %v240, %v328
    %330 = vmatmul.bf16.gmra.mxu0 %v297
    %v331 = vpop.f32.mrf.mxu0
    %v332 = vadd.f32 %v240, %v331
    %v333 = vpop.f32.mrf.mxu0
    %v334 = vadd.f32 %v240, %v333
    %335 = vmatmul.bf16.gmra.mxu0 %v300
    %v336 = vpop.f32.mrf.mxu0
    %v337 = vadd.f32 %v240, %v336
    %v338 = vpop.f32.mrf.mxu0
    %v339 = vadd.f32 %v240, %v338
    %340 = vmatmul.bf16.gmra.mxu0 %v303
    %v341 = vpop.f32.mrf.mxu0
    %v342 = vadd.f32 %v240, %v341
    %v343 = vpop.f32.mrf.mxu0
    %v344 = vadd.f32 %v240, %v343
    %345 = vmatmul.bf16.gmra.mxu0 %v306
    %v346 = vpop.f32.mrf.mxu0
    %v347 = vadd.f32 %v240, %v346
    %v348 = vpop.f32.mrf.mxu0
    %v349 = vadd.f32 %v240, %v348
    %350 = vmatmul.bf16.gmra.mxu0 %v309
    %v351 = vpop.f32.mrf.mxu0
    %v352 = vadd.f32 %v240, %v351
    %v353 = vpop.f32.mrf.mxu0
    %v354 = vadd.f32 %v240, %v353
    %355 = vmatmul.bf16.gmra.mxu0 %v312
    %v356 = vpop.f32.mrf.mxu0
    %v357 = vadd.f32 %v240, %v356
    %v358 = vpop.f32.mrf.mxu0
    %v359 = vadd.f32 %v240, %v358
    %360 = vmatmul.bf16.gmra.mxu0 %v315
    %v361 = vpop.f32.mrf.mxu0
    %v362 = vadd.f32 %v240, %v361
    %v363 = vpop.f32.mrf.mxu0
    %v364 = vadd.f32 %v240, %v363
    %365 = vdwg.mxu0
    %s366 = scalar_lea.vmem %s1, 128
    %v367 = vld [vmem:[%s366] sm:$0xf]
    %v368 = vld [vmem:[%s366 + $0x4] sm:$0xf]
    %v369 = vld [vmem:[%s366 + $0x8] sm:$0xf]
    %v370 = vld [vmem:[%s366 + $0xc] sm:$0xf]
    %v371 = vld [vmem:[%s366 + $0x10] sm:$0xf]
    %v372 = vld [vmem:[%s366 + $0x14] sm:$0xf]
    %v373 = vld [vmem:[%s366 + $0x18] sm:$0xf]
    %v374 = vld [vmem:[%s366 + $0x1c] sm:$0xf]
    %v375 = vld [vmem:[%s366 + $0x20] sm:$0xf]
    %v376 = vld [vmem:[%s366 + $0x24] sm:$0xf]
    %v377 = vld [vmem:[%s366 + $0x28] sm:$0xf]
    %v378 = vld [vmem:[%s366 + $0x2c] sm:$0xf]
    %v379 = vld [vmem:[%s366 + $0x30] sm:$0xf]
    %v380 = vld [vmem:[%s366 + $0x34] sm:$0xf]
    %v381 = vld [vmem:[%s366 + $0x38] sm:$0xf]
    %v382 = vld [vmem:[%s366 + $0x3c] sm:$0xf]
    %v383 = vld [vmem:[%s2 + $0x8] sm:$0xf]
    %v384 = vld [vmem:[%s2 + $0x14] sm:$0xf]
    %v385 = vld [vmem:[%s2 + $0x20] sm:$0xf]
    %v386 = vld [vmem:[%s2 + $0x2c] sm:$0xf]
    %v387 = vld [vmem:[#allocation7 + $0x8] sm:$0x1]
    %v388 = vperm.slane %v387, 0
    %v405 = vunpack.c.l.b16 %v367
    %v406 = vunpack.c.l.b16 %v368
    %v407 = vunpack.c.l.b16 %v369
    %v408 = vunpack.c.l.b16 %v370
    %v409 = vunpack.c.l.b16 %v371
    %v410 = vunpack.c.l.b16 %v372
    %v411 = vunpack.c.l.b16 %v373
    %v412 = vunpack.c.l.b16 %v374
    %v413 = vunpack.c.l.b16 %v375
    %v414 = vunpack.c.l.b16 %v376
    %v415 = vunpack.c.l.b16 %v377
    %v416 = vunpack.c.l.b16 %v378
    %v417 = vunpack.c.l.b16 %v379
    %v418 = vunpack.c.l.b16 %v380
    %v419 = vunpack.c.l.b16 %v381
    %v420 = vunpack.c.l.b16 %v382
    %v421 = vpack.c.b16 %v406, %v405
    %v422 = vpack.c.b16 %v408, %v407
    %v423 = vpack.c.b16 %v410, %v409
    %v424 = vpack.c.b16 %v412, %v411
    %v425 = vpack.c.b16 %v414, %v413
    %v426 = vpack.c.b16 %v416, %v415
    %v427 = vpack.c.b16 %v418, %v417
    %v428 = vpack.c.b16 %v420, %v419
    %v433 = vunpack.c.l.b16 %v383
    %v434 = vunpack.c.l.b16 %v384
    %v435 = vunpack.c.l.b16 %v385
    %v436 = vunpack.c.l.b16 %v386
    %v437 = vpack.c.b16 %v434, %v433
    %v438 = vpack.c.b16 %v436, %v435
    %v442 = vsel %vm144, %v421, 0
    %v445 = vsel %vm144, %v422, 0
    %v448 = vsel %vm144, %v423, 0
    %v451 = vsel %vm144, %v424, 0
    %v454 = vsel %vm144, %v425, 0
    %v457 = vsel %vm144, %v426, 0
    %v460 = vsel %vm144, %v427, 0
    %v463 = vsel %vm144, %v428, 0
    %465 = vmatpush.bf16.msra.mxu0 0
    %466 = vmatpush.bf16.msra.mxu0 0
    %467 = vmatpush.bf16.msra.mxu0 0
    %468 = vmatpush.bf16.msra.mxu0 0
    %469 = vmatpush.bf16.msra.mxu0 0
    %470 = vmatpush.bf16.msra.mxu0 0
    %471 = vmatpush.bf16.msra.mxu0 %v438
    %472 = vmatpush.bf16.msra.mxu0 %v437
    %473 = vmatmul.bf16.gmra.mxu0 %v442
    %v474 = vpop.f32.mrf.mxu0
    %v475 = vadd.f32 %v388, %v474
    %v476 = vpop.f32.mrf.mxu0
    %v477 = vadd.f32 %v388, %v476
    %478 = vmatmul.bf16.gmra.mxu0 %v445
    %v479 = vpop.f32.mrf.mxu0
    %v480 = vadd.f32 %v388, %v479
    %v481 = vpop.f32.mrf.mxu0
    %v482 = vadd.f32 %v388, %v481
    %483 = vmatmul.bf16.gmra.mxu0 %v448
    %v484 = vpop.f32.mrf.mxu0
    %v485 = vadd.f32 %v388, %v484
    %v486 = vpop.f32.mrf.mxu0
    %v487 = vadd.f32 %v388, %v486
    %488 = vmatmul.bf16.gmra.mxu0 %v451
    %v489 = vpop.f32.mrf.mxu0
    %v490 = vadd.f32 %v388, %v489
    %v491 = vpop.f32.mrf.mxu0
    %v492 = vadd.f32 %v388, %v491
    %493 = vmatmul.bf16.gmra.mxu0 %v454
    %v494 = vpop.f32.mrf.mxu0
    %v495 = vadd.f32 %v388, %v494
    %v496 = vpop.f32.mrf.mxu0
    %v497 = vadd.f32 %v388, %v496
    %498 = vmatmul.bf16.gmra.mxu0 %v457
    %v499 = vpop.f32.mrf.mxu0
    %v500 = vadd.f32 %v388, %v499
    %v501 = vpop.f32.mrf.mxu0
    %v502 = vadd.f32 %v388, %v501
    %503 = vmatmul.bf16.gmra.mxu0 %v460
    %v504 = vpop.f32.mrf.mxu0
    %v505 = vadd.f32 %v388, %v504
    %v506 = vpop.f32.mrf.mxu0
    %v507 = vadd.f32 %v388, %v506
    %508 = vmatmul.bf16.gmra.mxu0 %v463
    %v509 = vpop.f32.mrf.mxu0
    %v510 = vadd.f32 %v388, %v509
    %v511 = vpop.f32.mrf.mxu0
    %v512 = vadd.f32 %v388, %v511
    %513 = vdwg.mxu0
    %v514 = vmax.f32 %v179, 0.0
    %v515 = vmax.f32 %v181, 0.0
    %v516 = vmax.f32 %v184, 0.0
    %v517 = vmax.f32 %v186, 0.0
    %v518 = vmax.f32 %v189, 0.0
    %v519 = vmax.f32 %v191, 0.0
    %v520 = vmax.f32 %v194, 0.0
    %v521 = vmax.f32 %v196, 0.0
    %v522 = vmax.f32 %v199, 0.0
    %v523 = vmax.f32 %v201, 0.0
    %v524 = vmax.f32 %v204, 0.0
    %v525 = vmax.f32 %v206, 0.0
    %v526 = vmax.f32 %v209, 0.0
    %v527 = vmax.f32 %v211, 0.0
    %v528 = vmax.f32 %v214, 0.0
    %v529 = vmax.f32 %v216, 0.0
    %v530 = vld [vmem:[#allocation2] sm:$0xf]
    %v531 = vld [vmem:[#allocation2 + $0x4] sm:$0xf]
    %v532 = vld [vmem:[#allocation2 + $0x8] sm:$0xf]
    %v533 = vld [vmem:[#allocation2 + $0xc] sm:$0xf]
    %v534 = vld [vmem:[#allocation2 + $0x10] sm:$0xf]
    %v535 = vld [vmem:[#allocation2 + $0x14] sm:$0xf]
    %v536 = vld [vmem:[#allocation2 + $0x18] sm:$0xf]
    %v537 = vld [vmem:[#allocation2 + $0x1c] sm:$0xf]
    %v538 = vld [vmem:[#allocation2 + $0x20] sm:$0xf]
    %v539 = vld [vmem:[#allocation2 + $0x24] sm:$0xf]
    %v540 = vld [vmem:[#allocation2 + $0x28] sm:$0xf]
    %v541 = vld [vmem:[#allocation2 + $0x2c] sm:$0xf]
    %v542 = vld [vmem:[#allocation2 + $0x30] sm:$0xf]
    %v543 = vld [vmem:[#allocation2 + $0x34] sm:$0xf]
    %v544 = vld [vmem:[#allocation2 + $0x38] sm:$0xf]
    %v545 = vld [vmem:[#allocation2 + $0x3c] sm:$0xf]
    %v546 = vpack.c.bf16 %v329, %v327
    %v547 = vpack.c.bf16 %v334, %v332
    %v548 = vpack.c.bf16 %v339, %v337
    %v549 = vpack.c.bf16 %v344, %v342
    %v550 = vpack.c.bf16 %v349, %v347
    %v551 = vpack.c.bf16 %v354, %v352
    %v552 = vpack.c.bf16 %v359, %v357
    %v553 = vpack.c.bf16 %v364, %v362
    %v570 = vunpack.c.l.b16 %v530
    %v571 = vunpack.c.l.b16 %v531
    %v572 = vunpack.c.l.b16 %v532
    %v573 = vunpack.c.l.b16 %v533
    %v574 = vunpack.c.l.b16 %v534
    %v575 = vunpack.c.l.b16 %v535
    %v576 = vunpack.c.l.b16 %v536
    %v577 = vunpack.c.l.b16 %v537
    %v578 = vunpack.c.l.b16 %v538
    %v579 = vunpack.c.l.b16 %v539
    %v580 = vunpack.c.l.b16 %v540
    %v581 = vunpack.c.l.b16 %v541
    %v582 = vunpack.c.l.b16 %v542
    %v583 = vunpack.c.l.b16 %v543
    %v584 = vunpack.c.l.b16 %v544
    %v585 = vunpack.c.l.b16 %v545
    %v586 = vpack.c.b16 %v571, %v570
    %v587 = vpack.c.b16 %v573, %v572
    %v588 = vpack.c.b16 %v575, %v574
    %v589 = vpack.c.b16 %v577, %v576
    %v590 = vpack.c.b16 %v579, %v578
    %v591 = vpack.c.b16 %v581, %v580
    %v592 = vpack.c.b16 %v583, %v582
    %v593 = vpack.c.b16 %v585, %v584
    %602 = vmatpush.bf16.msra.mxu0 %v553
    %603 = vmatpush.bf16.msra.mxu0 %v552
    %604 = vmatpush.bf16.msra.mxu0 %v551
    %605 = vmatpush.bf16.msra.mxu0 %v550
    %606 = vmatpush.bf16.msra.mxu0 %v549
    %607 = vmatpush.bf16.msra.mxu0 %v548
    %608 = vmatpush.bf16.msra.mxu0 %v547
    %609 = vmatpush.bf16.msra.mxu0 %v546
    %610 = vmatmul.bf16.gmra.mxu0 %v586
    %v611 = vpop.f32.mrf.mxu0
    %v612 = vadd.f32 0.0, %v611
    %v613 = vpop.f32.mrf.mxu0
    %v614 = vadd.f32 0.0, %v613
    %615 = vmatmul.bf16.gmra.mxu0 %v587
    %v616 = vpop.f32.mrf.mxu0
    %v617 = vadd.f32 0.0, %v616
    %v618 = vpop.f32.mrf.mxu0
    %v619 = vadd.f32 0.0, %v618
    %620 = vmatmul.bf16.gmra.mxu0 %v588
    %v621 = vpop.f32.mrf.mxu0
    %v622 = vadd.f32 0.0, %v621
    %v623 = vpop.f32.mrf.mxu0
    %v624 = vadd.f32 0.0, %v623
    %625 = vmatmul.bf16.gmra.mxu0 %v589
    %v626 = vpop.f32.mrf.mxu0
    %v627 = vadd.f32 0.0, %v626
    %v628 = vpop.f32.mrf.mxu0
    %v629 = vadd.f32 0.0, %v628
    %630 = vmatmul.bf16.gmra.mxu0 %v590
    %v631 = vpop.f32.mrf.mxu0
    %v632 = vadd.f32 0.0, %v631
    %v633 = vpop.f32.mrf.mxu0
    %v634 = vadd.f32 0.0, %v633
    %635 = vmatmul.bf16.gmra.mxu0 %v591
    %v636 = vpop.f32.mrf.mxu0
    %v637 = vadd.f32 0.0, %v636
    %v638 = vpop.f32.mrf.mxu0
    %v639 = vadd.f32 0.0, %v638
    %640 = vmatmul.bf16.gmra.mxu0 %v592
    %v641 = vpop.f32.mrf.mxu0
    %v642 = vadd.f32 0.0, %v641
    %v643 = vpop.f32.mrf.mxu0
    %v644 = vadd.f32 0.0, %v643
    %645 = vmatmul.bf16.gmra.mxu0 %v593
    %v646 = vpop.f32.mrf.mxu0
    %v647 = vadd.f32 0.0, %v646
    %v648 = vpop.f32.mrf.mxu0
    %v649 = vadd.f32 0.0, %v648
    %650 = vdwg.mxu0
    %v651 = vmax.f32 %v612, 0.0
    %v652 = vmax.f32 %v614, 0.0
    %v653 = vmax.f32 %v617, 0.0
    %v654 = vmax.f32 %v619, 0.0
    %v655 = vmax.f32 %v622, 0.0
    %v656 = vmax.f32 %v624, 0.0
    %v657 = vmax.f32 %v627, 0.0
    %v658 = vmax.f32 %v629, 0.0
    %v659 = vmax.f32 %v632, 0.0
    %v660 = vmax.f32 %v634, 0.0
    %v661 = vmax.f32 %v637, 0.0
    %v662 = vmax.f32 %v639, 0.0
    %v663 = vmax.f32 %v642, 0.0
    %v664 = vmax.f32 %v644, 0.0
    %v665 = vmax.f32 %v647, 0.0
    %v666 = vmax.f32 %v649, 0.0
    %v667 = vadd.f32 %v514, %v651
    %v668 = vadd.f32 %v515, %v652
    %v669 = vadd.f32 %v516, %v653
    %v670 = vadd.f32 %v517, %v654
    %v671 = vadd.f32 %v518, %v655
    %v672 = vadd.f32 %v519, %v656
    %v673 = vadd.f32 %v520, %v657
    %v674 = vadd.f32 %v521, %v658
    %v675 = vadd.f32 %v522, %v659
    %v676 = vadd.f32 %v523, %v660
    %v677 = vadd.f32 %v524, %v661
    %v678 = vadd.f32 %v525, %v662
    %v679 = vadd.f32 %v526, %v663
    %v680 = vadd.f32 %v527, %v664
    %v681 = vadd.f32 %v528, %v665
    %v682 = vadd.f32 %v529, %v666
    %s683 = scalar_lea.vmem [#allocation2], 64
    %v684 = vld [vmem:[%s683] sm:$0xf]
    %v685 = vld [vmem:[%s683 + $0x4] sm:$0xf]
    %v686 = vld [vmem:[%s683 + $0x8] sm:$0xf]
    %v687 = vld [vmem:[%s683 + $0xc] sm:$0xf]
    %v688 = vld [vmem:[%s683 + $0x10] sm:$0xf]
    %v689 = vld [vmem:[%s683 + $0x14] sm:$0xf]
    %v690 = vld [vmem:[%s683 + $0x18] sm:$0xf]
    %v691 = vld [vmem:[%s683 + $0x1c] sm:$0xf]
    %v692 = vld [vmem:[%s683 + $0x20] sm:$0xf]
    %v693 = vld [vmem:[%s683 + $0x24] sm:$0xf]
    %v694 = vld [vmem:[%s683 + $0x28] sm:$0xf]
    %v695 = vld [vmem:[%s683 + $0x2c] sm:$0xf]
    %v696 = vld [vmem:[%s683 + $0x30] sm:$0xf]
    %v697 = vld [vmem:[%s683 + $0x34] sm:$0xf]
    %v698 = vld [vmem:[%s683 + $0x38] sm:$0xf]
    %v699 = vld [vmem:[%s683 + $0x3c] sm:$0xf]
    %v700 = vpack.c.bf16 %v477, %v475
    %v701 = vpack.c.bf16 %v482, %v480
    %v702 = vpack.c.bf16 %v487, %v485
    %v703 = vpack.c.bf16 %v492, %v490
    %v704 = vpack.c.bf16 %v497, %v495
    %v705 = vpack.c.bf16 %v502, %v500
    %v706 = vpack.c.bf16 %v507, %v505
    %v707 = vpack.c.bf16 %v512, %v510
    %v724 = vunpack.c.l.b16 %v684
    %v725 = vunpack.c.l.b16 %v685
    %v726 = vunpack.c.l.b16 %v686
    %v727 = vunpack.c.l.b16 %v687
    %v728 = vunpack.c.l.b16 %v688
    %v729 = vunpack.c.l.b16 %v689
    %v730 = vunpack.c.l.b16 %v690
    %v731 = vunpack.c.l.b16 %v691
    %v732 = vunpack.c.l.b16 %v692
    %v733 = vunpack.c.l.b16 %v693
    %v734 = vunpack.c.l.b16 %v694
    %v735 = vunpack.c.l.b16 %v695
    %v736 = vunpack.c.l.b16 %v696
    %v737 = vunpack.c.l.b16 %v697
    %v738 = vunpack.c.l.b16 %v698
    %v739 = vunpack.c.l.b16 %v699
    %v740 = vpack.c.b16 %v725, %v724
    %v741 = vpack.c.b16 %v727, %v726
    %v742 = vpack.c.b16 %v729, %v728
    %v743 = vpack.c.b16 %v731, %v730
    %v744 = vpack.c.b16 %v733, %v732
    %v745 = vpack.c.b16 %v735, %v734
    %v746 = vpack.c.b16 %v737, %v736
    %v747 = vpack.c.b16 %v739, %v738
    %756 = vmatpush.bf16.msra.mxu0 %v707
    %757 = vmatpush.bf16.msra.mxu0 %v706
    %758 = vmatpush.bf16.msra.mxu0 %v705
    %759 = vmatpush.bf16.msra.mxu0 %v704
    %760 = vmatpush.bf16.msra.mxu0 %v703
    %761 = vmatpush.bf16.msra.mxu0 %v702
    %762 = vmatpush.bf16.msra.mxu0 %v701
    %763 = vmatpush.bf16.msra.mxu0 %v700
    %764 = vmatmul.bf16.gmra.mxu0 %v740
    %v765 = vpop.f32.mrf.mxu0
    %v766 = vadd.f32 0.0, %v765
    %v767 = vpop.f32.mrf.mxu0
    %v768 = vadd.f32 0.0, %v767
    %769 = vmatmul.bf16.gmra.mxu0 %v741
    %v770 = vpop.f32.mrf.mxu0
    %v771 = vadd.f32 0.0, %v770
    %v772 = vpop.f32.mrf.mxu0
    %v773 = vadd.f32 0.0, %v772
    %774 = vmatmul.bf16.gmra.mxu0 %v742
    %v775 = vpop.f32.mrf.mxu0
    %v776 = vadd.f32 0.0, %v775
    %v777 = vpop.f32.mrf.mxu0
    %v778 = vadd.f32 0.0, %v777
    %779 = vmatmul.bf16.gmra.mxu0 %v743
    %v780 = vpop.f32.mrf.mxu0
    %v781 = vadd.f32 0.0, %v780
    %v782 = vpop.f32.mrf.mxu0
    %v783 = vadd.f32 0.0, %v782
    %784 = vmatmul.bf16.gmra.mxu0 %v744
    %v785 = vpop.f32.mrf.mxu0
    %v786 = vadd.f32 0.0, %v785
    %v787 = vpop.f32.mrf.mxu0
    %v788 = vadd.f32 0.0, %v787
    %789 = vmatmul.bf16.gmra.mxu0 %v745
    %v790 = vpop.f32.mrf.mxu0
    %v791 = vadd.f32 0.0, %v790
    %v792 = vpop.f32.mrf.mxu0
    %v793 = vadd.f32 0.0, %v792
    %794 = vmatmul.bf16.gmra.mxu0 %v746
    %v795 = vpop.f32.mrf.mxu0
    %v796 = vadd.f32 0.0, %v795
    %v797 = vpop.f32.mrf.mxu0
    %v798 = vadd.f32 0.0, %v797
    %799 = vmatmul.bf16.gmra.mxu0 %v747
    %v800 = vpop.f32.mrf.mxu0
    %v801 = vadd.f32 0.0, %v800
    %v802 = vpop.f32.mrf.mxu0
    %v803 = vadd.f32 0.0, %v802
    %804 = vdwg.mxu0
    %v805 = vmax.f32 %v766, 0.0
    %v806 = vmax.f32 %v768, 0.0
    %v807 = vmax.f32 %v771, 0.0
    %v808 = vmax.f32 %v773, 0.0
    %v809 = vmax.f32 %v776, 0.0
    %v810 = vmax.f32 %v778, 0.0
    %v811 = vmax.f32 %v781, 0.0
    %v812 = vmax.f32 %v783, 0.0
    %v813 = vmax.f32 %v786, 0.0
    %v814 = vmax.f32 %v788, 0.0
    %v815 = vmax.f32 %v791, 0.0
    %v816 = vmax.f32 %v793, 0.0
    %v817 = vmax.f32 %v796, 0.0
    %v818 = vmax.f32 %v798, 0.0
    %v819 = vmax.f32 %v801, 0.0
    %v820 = vmax.f32 %v803, 0.0
    %v821 = vadd.f32 %v667, %v805
    %v822 = vadd.f32 %v668, %v806
    %v823 = vadd.f32 %v669, %v807
    %v824 = vadd.f32 %v670, %v808
    %v825 = vadd.f32 %v671, %v809
    %v826 = vadd.f32 %v672, %v810
    %v827 = vadd.f32 %v673, %v811
    %v828 = vadd.f32 %v674, %v812
    %v829 = vadd.f32 %v675, %v813
    %v830 = vadd.f32 %v676, %v814
    %v831 = vadd.f32 %v677, %v815
    %v832 = vadd.f32 %v678, %v816
    %v833 = vadd.f32 %v679, %v817
    %v834 = vadd.f32 %v680, %v818
    %v835 = vadd.f32 %v681, %v819
    %v836 = vadd.f32 %v682, %v820
    %v837 = vpack.c.bf16 %v822, %v821
    %v838 = vpack.c.bf16 %v824, %v823
    %v839 = vpack.c.bf16 %v826, %v825
    %v840 = vpack.c.bf16 %v828, %v827
    %v841 = vpack.c.bf16 %v830, %v829
    %v842 = vpack.c.bf16 %v832, %v831
    %v843 = vpack.c.bf16 %v834, %v833
    %v844 = vpack.c.bf16 %v836, %v835
    %v845 = vld [vmem:[%s3] sm:$0xff]
    %v846 = vld [vmem:[%s3 + $0x8] sm:$0xf]
    %v847 = vld [vmem:[%s3 + $0xc] sm:$0xff]
    %v848 = vld [vmem:[%s3 + $0x14] sm:$0xf]
    %v849 = vld [vmem:[%s3 + $0x18] sm:$0xff]
    %v850 = vld [vmem:[%s3 + $0x20] sm:$0xf]
    %v851 = vld [vmem:[%s3 + $0x24] sm:$0xff]
    %v852 = vld [vmem:[%s3 + $0x2c] sm:$0xf]
    %v853 = vld [vmem:[%s3 + $0x30] sm:$0xff]
    %v854 = vld [vmem:[%s3 + $0x38] sm:$0xf]
    %v855 = vld [vmem:[%s3 + $0x3c] sm:$0xff]
    %v856 = vld [vmem:[%s3 + $0x44] sm:$0xf]
    %v857 = vld [vmem:[%s3 + $0x48] sm:$0xff]
    %v858 = vld [vmem:[%s3 + $0x50] sm:$0xf]
    %v859 = vld [vmem:[%s3 + $0x54] sm:$0xff]
    %v860 = vld [vmem:[%s3 + $0x5c] sm:$0xf]
    %v861 = vld [vmem:[%s3 + $0x60] sm:$0xff]
    %v862 = vld [vmem:[%s3 + $0x68] sm:$0xf]
    %v863 = vld [vmem:[%s3 + $0x6c] sm:$0xff]
    %v864 = vld [vmem:[%s3 + $0x74] sm:$0xf]
    %v865 = vld [vmem:[%s3 + $0x78] sm:$0xff]
    %v866 = vld [vmem:[%s3 + $0x80] sm:$0xf]
    %v867 = vld [vmem:[%s3 + $0x84] sm:$0xff]
    %v868 = vld [vmem:[%s3 + $0x8c] sm:$0xf]
    %v869 = vld [vmem:[%s3 + $0x90] sm:$0xff]
    %v870 = vld [vmem:[%s3 + $0x98] sm:$0xf]
    %v871 = vld [vmem:[%s3 + $0x9c] sm:$0xff]
    %v872 = vld [vmem:[%s3 + $0xa4] sm:$0xf]
    %v873 = vld [vmem:[%s3 + $0xa8] sm:$0xff]
    %v874 = vld [vmem:[%s3 + $0xb0] sm:$0xf]
    %v875 = vld [vmem:[%s3 + $0xb4] sm:$0xff]
    %v876 = vld [vmem:[%s3 + $0xbc] sm:$0xf]
    %s877 = scalar_lea.vmem [#allocation7], 1
    %v878 = vld [vmem:[%s877] ss:$4 sm:$0x7]
    %v880 = vperm.slane %v878, 0
    %v881 = vperm.slane %v878, 1
    %v882 = vperm.slane %v878, 2
    %v918 = vunpack.c.l.b16 %v845
    %v919 = vunpack.c.h.b16 %v845
    %v920 = vunpack.c.l.b16 %v846
    %v921 = vunpack.c.l.b16 %v847
    %v922 = vunpack.c.h.b16 %v847
    %v923 = vunpack.c.l.b16 %v848
    %v924 = vunpack.c.l.b16 %v849
    %v925 = vunpack.c.h.b16 %v849
    %v926 = vunpack.c.l.b16 %v850
    %v927 = vunpack.c.l.b16 %v851
    %v928 = vunpack.c.h.b16 %v851
    %v929 = vunpack.c.l.b16 %v852
    %v930 = vunpack.c.l.b16 %v853
    %v931 = vunpack.c.h.b16 %v853
    %v932 = vunpack.c.l.b16 %v854
    %v933 = vunpack.c.l.b16 %v855
    %v934 = vunpack.c.h.b16 %v855
    %v935 = vunpack.c.l.b16 %v856
    %v936 = vunpack.c.l.b16 %v857
    %v937 = vunpack.c.h.b16 %v857
    %v938 = vunpack.c.l.b16 %v858
    %v939 = vunpack.c.l.b16 %v859
    %v940 = vunpack.c.h.b16 %v859
    %v941 = vunpack.c.l.b16 %v860
    %v942 = vunpack.c.l.b16 %v861
    %v943 = vunpack.c.h.b16 %v861
    %v944 = vunpack.c.l.b16 %v862
    %v945 = vunpack.c.l.b16 %v863
    %v946 = vunpack.c.h.b16 %v863
    %v947 = vunpack.c.l.b16 %v864
    %v948 = vunpack.c.l.b16 %v865
    %v949 = vunpack.c.h.b16 %v865
    %v950 = vunpack.c.l.b16 %v866
    %v951 = vunpack.c.l.b16 %v867
    %v952 = vunpack.c.h.b16 %v867
    %v953 = vunpack.c.l.b16 %v868
    %v954 = vunpack.c.l.b16 %v869
    %v955 = vunpack.c.h.b16 %v869
    %v956 = vunpack.c.l.b16 %v870
    %v957 = vunpack.c.l.b16 %v871
    %v958 = vunpack.c.h.b16 %v871
    %v959 = vunpack.c.l.b16 %v872
    %v960 = vunpack.c.l.b16 %v873
    %v961 = vunpack.c.h.b16 %v873
    %v962 = vunpack.c.l.b16 %v874
    %v963 = vunpack.c.l.b16 %v875
    %v964 = vunpack.c.h.b16 %v875
    %v965 = vunpack.c.l.b16 %v876
    %v966 = vpack.c.b16 %v921, %v918
    %v967 = vpack.c.b16 %v922, %v919
    %v968 = vpack.c.b16 %v923, %v920
    %v969 = vpack.c.b16 %v927, %v924
    %v970 = vpack.c.b16 %v928, %v925
    %v971 = vpack.c.b16 %v929, %v926
    %v972 = vpack.c.b16 %v933, %v930
    %v973 = vpack.c.b16 %v934, %v931
    %v974 = vpack.c.b16 %v935, %v932
    %v975 = vpack.c.b16 %v939, %v936
    %v976 = vpack.c.b16 %v940, %v937
    %v977 = vpack.c.b16 %v941, %v938
    %v978 = vpack.c.b16 %v945, %v942
    %v979 = vpack.c.b16 %v946, %v943
    %v980 = vpack.c.b16 %v947, %v944
    %v981 = vpack.c.b16 %v951, %v948
    %v982 = vpack.c.b16 %v952, %v949
    %v983 = vpack.c.b16 %v953, %v950
    %v984 = vpack.c.b16 %v957, %v954
    %v985 = vpack.c.b16 %v958, %v955
    %v986 = vpack.c.b16 %v959, %v956
    %v987 = vpack.c.b16 %v963, %v960
    %v988 = vpack.c.b16 %v964, %v961
    %v989 = vpack.c.b16 %v965, %v962
    %1014 = vmatpush.bf16.msra.mxu0 %v987
    %1015 = vmatpush.bf16.msra.mxu0 %v984
    %1016 = vmatpush.bf16.msra.mxu0 %v981
    %1017 = vmatpush.bf16.msra.mxu0 %v978
    %1018 = vmatpush.bf16.msra.mxu0 %v975
    %1019 = vmatpush.bf16.msra.mxu0 %v972
    %1020 = vmatpush.bf16.msra.mxu0 %v969
    %1021 = vmatpush.bf16.msra.mxu0 %v966
    %1022 = vmatmul.bf16.gmra.mxu0 %v837
    %v1023 = vpop.f32.mrf.mxu0
    %v1024 = vadd.f32 %v880, %v1023
    %v1025 = vpop.f32.mrf.mxu0
    %v1026 = vadd.f32 %v880, %v1025
    %1027 = vmatmul.bf16.gmra.mxu0 %v838
    %v1028 = vpop.f32.mrf.mxu0
    %v1029 = vadd.f32 %v880, %v1028
    %v1030 = vpop.f32.mrf.mxu0
    %v1031 = vadd.f32 %v880, %v1030
    %1032 = vmatmul.bf16.gmra.mxu0 %v839
    %v1033 = vpop.f32.mrf.mxu0
    %v1034 = vadd.f32 %v880, %v1033
    %v1035 = vpop.f32.mrf.mxu0
    %v1036 = vadd.f32 %v880, %v1035
    %1037 = vmatmul.bf16.gmra.mxu0 %v840
    %v1038 = vpop.f32.mrf.mxu0
    %v1039 = vadd.f32 %v880, %v1038
    %v1040 = vpop.f32.mrf.mxu0
    %v1041 = vadd.f32 %v880, %v1040
    %1042 = vmatmul.bf16.gmra.mxu0 %v841
    %v1043 = vpop.f32.mrf.mxu0
    %v1044 = vadd.f32 %v880, %v1043
    %v1045 = vpop.f32.mrf.mxu0
    %v1046 = vadd.f32 %v880, %v1045
    %1047 = vmatmul.bf16.gmra.mxu0 %v842
    %v1048 = vpop.f32.mrf.mxu0
    %v1049 = vadd.f32 %v880, %v1048
    %v1050 = vpop.f32.mrf.mxu0
    %v1051 = vadd.f32 %v880, %v1050
    %1052 = vmatmul.bf16.gmra.mxu0 %v843
    %v1053 = vpop.f32.mrf.mxu0
    %v1054 = vadd.f32 %v880, %v1053
    %v1055 = vpop.f32.mrf.mxu0
    %v1056 = vadd.f32 %v880, %v1055
    %1057 = vmatmul.bf16.gmra.mxu0 %v844
    %v1058 = vpop.f32.mrf.mxu0
    %v1059 = vadd.f32 %v880, %v1058
    %v1060 = vpop.f32.mrf.mxu0
    %v1061 = vadd.f32 %v880, %v1060
    %1062 = vdwg.mxu0
    %1063 = vmatpush.bf16.msra.mxu0 %v988
    %1064 = vmatpush.bf16.msra.mxu0 %v985
    %1065 = vmatpush.bf16.msra.mxu0 %v982
    %1066 = vmatpush.bf16.msra.mxu0 %v979
    %1067 = vmatpush.bf16.msra.mxu0 %v976
    %1068 = vmatpush.bf16.msra.mxu0 %v973
    %1069 = vmatpush.bf16.msra.mxu0 %v970
    %1070 = vmatpush.bf16.msra.mxu0 %v967
    %1071 = vmatmul.bf16.gmra.mxu0 %v837
    %v1072 = vpop.f32.mrf.mxu0
    %v1073 = vadd.f32 %v881, %v1072
    %v1074 = vpop.f32.mrf.mxu0
    %v1075 = vadd.f32 %v881, %v1074
    %1076 = vmatmul.bf16.gmra.mxu0 %v838
    %v1077 = vpop.f32.mrf.mxu0
    %v1078 = vadd.f32 %v881, %v1077
    %v1079 = vpop.f32.mrf.mxu0
    %v1080 = vadd.f32 %v881, %v1079
    %1081 = vmatmul.bf16.gmra.mxu0 %v839
    %v1082 = vpop.f32.mrf.mxu0
    %v1083 = vadd.f32 %v881, %v1082
    %v1084 = vpop.f32.mrf.mxu0
    %v1085 = vadd.f32 %v881, %v1084
    %1086 = vmatmul.bf16.gmra.mxu0 %v840
    %v1087 = vpop.f32.mrf.mxu0
    %v1088 = vadd.f32 %v881, %v1087
    %v1089 = vpop.f32.mrf.mxu0
    %v1090 = vadd.f32 %v881, %v1089
    %1091 = vmatmul.bf16.gmra.mxu0 %v841
    %v1092 = vpop.f32.mrf.mxu0
    %v1093 = vadd.f32 %v881, %v1092
    %v1094 = vpop.f32.mrf.mxu0
    %v1095 = vadd.f32 %v881, %v1094
    %1096 = vmatmul.bf16.gmra.mxu0 %v842
    %v1097 = vpop.f32.mrf.mxu0
    %v1098 = vadd.f32 %v881, %v1097
    %v1099 = vpop.f32.mrf.mxu0
    %v1100 = vadd.f32 %v881, %v1099
    %1101 = vmatmul.bf16.gmra.mxu0 %v843
    %v1102 = vpop.f32.mrf.mxu0
    %v1103 = vadd.f32 %v881, %v1102
    %v1104 = vpop.f32.mrf.mxu0
    %v1105 = vadd.f32 %v881, %v1104
    %1106 = vmatmul.bf16.gmra.mxu0 %v844
    %v1107 = vpop.f32.mrf.mxu0
    %v1108 = vadd.f32 %v881, %v1107
    %v1109 = vpop.f32.mrf.mxu0
    %v1110 = vadd.f32 %v881, %v1109
    %1111 = vdwg.mxu0
    %1112 = vmatpush.bf16.msra.mxu0 %v989
    %1113 = vmatpush.bf16.msra.mxu0 %v986
    %1114 = vmatpush.bf16.msra.mxu0 %v983
    %1115 = vmatpush.bf16.msra.mxu0 %v980
    %1116 = vmatpush.bf16.msra.mxu0 %v977
    %1117 = vmatpush.bf16.msra.mxu0 %v974
    %1118 = vmatpush.bf16.msra.mxu0 %v971
    %1119 = vmatpush.bf16.msra.mxu0 %v968
    %1120 = vmatmul.bf16.gmra.mxu0 %v837
    %v1121 = vpop.f32.mrf.mxu0
    %v1122 = vadd.f32 %v882, %v1121
    %v1123 = vpop.f32.mrf.mxu0
    %v1124 = vadd.f32 %v882, %v1123
    %1125 = vmatmul.bf16.gmra.mxu0 %v838
    %v1126 = vpop.f32.mrf.mxu0
    %v1127 = vadd.f32 %v882, %v1126
    %v1128 = vpop.f32.mrf.mxu0
    %v1129 = vadd.f32 %v882, %v1128
    %1130 = vmatmul.bf16.gmra.mxu0 %v839
    %v1131 = vpop.f32.mrf.mxu0
    %v1132 = vadd.f32 %v882, %v1131
    %v1133 = vpop.f32.mrf.mxu0
    %v1134 = vadd.f32 %v882, %v1133
    %1135 = vmatmul.bf16.gmra.mxu0 %v840
    %v1136 = vpop.f32.mrf.mxu0
    %v1137 = vadd.f32 %v882, %v1136
    %v1138 = vpop.f32.mrf.mxu0
    %v1139 = vadd.f32 %v882, %v1138
    %1140 = vmatmul.bf16.gmra.mxu0 %v841
    %v1141 = vpop.f32.mrf.mxu0
    %v1142 = vadd.f32 %v882, %v1141
    %v1143 = vpop.f32.mrf.mxu0
    %v1144 = vadd.f32 %v882, %v1143
    %1145 = vmatmul.bf16.gmra.mxu0 %v842
    %v1146 = vpop.f32.mrf.mxu0
    %v1147 = vadd.f32 %v882, %v1146
    %v1148 = vpop.f32.mrf.mxu0
    %v1149 = vadd.f32 %v882, %v1148
    %1150 = vmatmul.bf16.gmra.mxu0 %v843
    %v1151 = vpop.f32.mrf.mxu0
    %v1152 = vadd.f32 %v882, %v1151
    %v1153 = vpop.f32.mrf.mxu0
    %v1154 = vadd.f32 %v882, %v1153
    %1155 = vmatmul.bf16.gmra.mxu0 %v844
    %v1156 = vpop.f32.mrf.mxu0
    %v1157 = vadd.f32 %v882, %v1156
    %v1158 = vpop.f32.mrf.mxu0
    %v1159 = vadd.f32 %v882, %v1158
    %1160 = vdwg.mxu0
    %v1161 = vmax.f32 %v1024, 0.0
    %v1162 = vmax.f32 %v1026, 0.0
    %v1163 = vmax.f32 %v1029, 0.0
    %v1164 = vmax.f32 %v1031, 0.0
    %v1165 = vmax.f32 %v1034, 0.0
    %v1166 = vmax.f32 %v1036, 0.0
    %v1167 = vmax.f32 %v1039, 0.0
    %v1168 = vmax.f32 %v1041, 0.0
    %v1169 = vmax.f32 %v1044, 0.0
    %v1170 = vmax.f32 %v1046, 0.0
    %v1171 = vmax.f32 %v1049, 0.0
    %v1172 = vmax.f32 %v1051, 0.0
    %v1173 = vmax.f32 %v1054, 0.0
    %v1174 = vmax.f32 %v1056, 0.0
    %v1175 = vmax.f32 %v1059, 0.0
    %v1176 = vmax.f32 %v1061, 0.0
    %v1177 = vpack.c.bf16 %v1075, %v1073
    %v1178 = vpack.c.bf16 %v1080, %v1078
    %v1179 = vpack.c.bf16 %v1085, %v1083
    %v1180 = vpack.c.bf16 %v1090, %v1088
    %v1181 = vpack.c.bf16 %v1095, %v1093
    %v1182 = vpack.c.bf16 %v1100, %v1098
    %v1183 = vpack.c.bf16 %v1105, %v1103
    %v1184 = vpack.c.bf16 %v1110, %v1108
    %1185 = vmatpush.bf16.msra.mxu0 %v1184
    %1186 = vmatpush.bf16.msra.mxu0 %v1183
    %1187 = vmatpush.bf16.msra.mxu0 %v1182
    %1188 = vmatpush.bf16.msra.mxu0 %v1181
    %1189 = vmatpush.bf16.msra.mxu0 %v1180
    %1190 = vmatpush.bf16.msra.mxu0 %v1179
    %1191 = vmatpush.bf16.msra.mxu0 %v1178
    %1192 = vmatpush.bf16.msra.mxu0 %v1177
    %1193 = vmatmul.bf16.gmra.mxu0 %v586
    %v1194 = vpop.f32.mrf.mxu0
    %v1195 = vadd.f32 0.0, %v1194
    %v1196 = vpop.f32.mrf.mxu0
    %v1197 = vadd.f32 0.0, %v1196
    %1198 = vmatmul.bf16.gmra.mxu0 %v587
    %v1199 = vpop.f32.mrf.mxu0
    %v1200 = vadd.f32 0.0, %v1199
    %v1201 = vpop.f32.mrf.mxu0
    %v1202 = vadd.f32 0.0, %v1201
    %1203 = vmatmul.bf16.gmra.mxu0 %v588
    %v1204 = vpop.f32.mrf.mxu0
    %v1205 = vadd.f32 0.0, %v1204
    %v1206 = vpop.f32.mrf.mxu0
    %v1207 = vadd.f32 0.0, %v1206
    %1208 = vmatmul.bf16.gmra.mxu0 %v589
    %v1209 = vpop.f32.mrf.mxu0
    %v1210 = vadd.f32 0.0, %v1209
    %v1211 = vpop.f32.mrf.mxu0
    %v1212 = vadd.f32 0.0, %v1211
    %1213 = vmatmul.bf16.gmra.mxu0 %v590
    %v1214 = vpop.f32.mrf.mxu0
    %v1215 = vadd.f32 0.0, %v1214
    %v1216 = vpop.f32.mrf.mxu0
    %v1217 = vadd.f32 0.0, %v1216
    %1218 = vmatmul.bf16.gmra.mxu0 %v591
    %v1219 = vpop.f32.mrf.mxu0
    %v1220 = vadd.f32 0.0, %v1219
    %v1221 = vpop.f32.mrf.mxu0
    %v1222 = vadd.f32 0.0, %v1221
    %1223 = vmatmul.bf16.gmra.mxu0 %v592
    %v1224 = vpop.f32.mrf.mxu0
    %v1225 = vadd.f32 0.0, %v1224
    %v1226 = vpop.f32.mrf.mxu0
    %v1227 = vadd.f32 0.0, %v1226
    %1228 = vmatmul.bf16.gmra.mxu0 %v593
    %v1229 = vpop.f32.mrf.mxu0
    %v1230 = vadd.f32 0.0, %v1229
    %v1231 = vpop.f32.mrf.mxu0
    %v1232 = vadd.f32 0.0, %v1231
    %1233 = vdwg.mxu0
    %v1234 = vmax.f32 %v1195, 0.0
    %v1235 = vmax.f32 %v1197, 0.0
    %v1236 = vmax.f32 %v1200, 0.0
    %v1237 = vmax.f32 %v1202, 0.0
    %v1238 = vmax.f32 %v1205, 0.0
    %v1239 = vmax.f32 %v1207, 0.0
    %v1240 = vmax.f32 %v1210, 0.0
    %v1241 = vmax.f32 %v1212, 0.0
    %v1242 = vmax.f32 %v1215, 0.0
    %v1243 = vmax.f32 %v1217, 0.0
    %v1244 = vmax.f32 %v1220, 0.0
    %v1245 = vmax.f32 %v1222, 0.0
    %v1246 = vmax.f32 %v1225, 0.0
    %v1247 = vmax.f32 %v1227, 0.0
    %v1248 = vmax.f32 %v1230, 0.0
    %v1249 = vmax.f32 %v1232, 0.0
    %v1250 = vadd.f32 %v1161, %v1234
    %v1251 = vadd.f32 %v1162, %v1235
    %v1252 = vadd.f32 %v1163, %v1236
    %v1253 = vadd.f32 %v1164, %v1237
    %v1254 = vadd.f32 %v1165, %v1238
    %v1255 = vadd.f32 %v1166, %v1239
    %v1256 = vadd.f32 %v1167, %v1240
    %v1257 = vadd.f32 %v1168, %v1241
    %v1258 = vadd.f32 %v1169, %v1242
    %v1259 = vadd.f32 %v1170, %v1243
    %v1260 = vadd.f32 %v1171, %v1244
    %v1261 = vadd.f32 %v1172, %v1245
    %v1262 = vadd.f32 %v1173, %v1246
    %v1263 = vadd.f32 %v1174, %v1247
    %v1264 = vadd.f32 %v1175, %v1248
    %v1265 = vadd.f32 %v1176, %v1249
    %v1266 = vpack.c.bf16 %v1124, %v1122
    %v1267 = vpack.c.bf16 %v1129, %v1127
    %v1268 = vpack.c.bf16 %v1134, %v1132
    %v1269 = vpack.c.bf16 %v1139, %v1137
    %v1270 = vpack.c.bf16 %v1144, %v1142
    %v1271 = vpack.c.bf16 %v1149, %v1147
    %v1272 = vpack.c.bf16 %v1154, %v1152
    %v1273 = vpack.c.bf16 %v1159, %v1157
    %1274 = vmatpush.bf16.msra.mxu0 %v1273
    %1275 = vmatpush.bf16.msra.mxu0 %v1272
    %1276 = vmatpush.bf16.msra.mxu0 %v1271
    %1277 = vmatpush.bf16.msra.mxu0 %v1270
    %1278 = vmatpush.bf16.msra.mxu0 %v1269
    %1279 = vmatpush.bf16.msra.mxu0 %v1268
    %1280 = vmatpush.bf16.msra.mxu0 %v1267
    %1281 = vmatpush.bf16.msra.mxu0 %v1266
    %1282 = vmatmul.bf16.gmra.mxu0 %v740
    %v1283 = vpop.f32.mrf.mxu0
    %v1284 = vadd.f32 0.0, %v1283
    %v1285 = vpop.f32.mrf.mxu0
    %v1286 = vadd.f32 0.0, %v1285
    %1287 = vmatmul.bf16.gmra.mxu0 %v741
    %v1288 = vpop.f32.mrf.mxu0
    %v1289 = vadd.f32 0.0, %v1288
    %v1290 = vpop.f32.mrf.mxu0
    %v1291 = vadd.f32 0.0, %v1290
    %1292 = vmatmul.bf16.gmra.mxu0 %v742
    %v1293 = vpop.f32.mrf.mxu0
    %v1294 = vadd.f32 0.0, %v1293
    %v1295 = vpop.f32.mrf.mxu0
    %v1296 = vadd.f32 0.0, %v1295
    %1297 = vmatmul.bf16.gmra.mxu0 %v743
    %v1298 = vpop.f32.mrf.mxu0
    %v1299 = vadd.f32 0.0, %v1298
    %v1300 = vpop.f32.mrf.mxu0
    %v1301 = vadd.f32 0.0, %v1300
    %1302 = vmatmul.bf16.gmra.mxu0 %v744
    %v1303 = vpop.f32.mrf.mxu0
    %v1304 = vadd.f32 0.0, %v1303
    %v1305 = vpop.f32.mrf.mxu0
    %v1306 = vadd.f32 0.0, %v1305
    %1307 = vmatmul.bf16.gmra.mxu0 %v745
    %v1308 = vpop.f32.mrf.mxu0
    %v1309 = vadd.f32 0.0, %v1308
    %v1310 = vpop.f32.mrf.mxu0
    %v1311 = vadd.f32 0.0, %v1310
    %1312 = vmatmul.bf16.gmra.mxu0 %v746
    %v1313 = vpop.f32.mrf.mxu0
    %v1314 = vadd.f32 0.0, %v1313
    %v1315 = vpop.f32.mrf.mxu0
    %v1316 = vadd.f32 0.0, %v1315
    %1317 = vmatmul.bf16.gmra.mxu0 %v747
    %v1318 = vpop.f32.mrf.mxu0
    %v1319 = vadd.f32 0.0, %v1318
    %v1320 = vpop.f32.mrf.mxu0
    %v1321 = vadd.f32 0.0, %v1320
    %1322 = vdwg.mxu0
    %v1323 = vmax.f32 %v1284, 0.0
    %v1324 = vmax.f32 %v1286, 0.0
    %v1325 = vmax.f32 %v1289, 0.0
    %v1326 = vmax.f32 %v1291, 0.0
    %v1327 = vmax.f32 %v1294, 0.0
    %v1328 = vmax.f32 %v1296, 0.0
    %v1329 = vmax.f32 %v1299, 0.0
    %v1330 = vmax.f32 %v1301, 0.0
    %v1331 = vmax.f32 %v1304, 0.0
    %v1332 = vmax.f32 %v1306, 0.0
    %v1333 = vmax.f32 %v1309, 0.0
    %v1334 = vmax.f32 %v1311, 0.0
    %v1335 = vmax.f32 %v1314, 0.0
    %v1336 = vmax.f32 %v1316, 0.0
    %v1337 = vmax.f32 %v1319, 0.0
    %v1338 = vmax.f32 %v1321, 0.0
    %v1339 = vadd.f32 %v1250, %v1323
    %v1340 = vadd.f32 %v1251, %v1324
    %v1341 = vadd.f32 %v1252, %v1325
    %v1342 = vadd.f32 %v1253, %v1326
    %v1343 = vadd.f32 %v1254, %v1327
    %v1344 = vadd.f32 %v1255, %v1328
    %v1345 = vadd.f32 %v1256, %v1329
    %v1346 = vadd.f32 %v1257, %v1330
    %v1347 = vadd.f32 %v1258, %v1331
    %v1348 = vadd.f32 %v1259, %v1332
    %v1349 = vadd.f32 %v1260, %v1333
    %v1350 = vadd.f32 %v1261, %v1334
    %v1351 = vadd.f32 %v1262, %v1335
    %v1352 = vadd.f32 %v1263, %v1336
    %v1353 = vadd.f32 %v1264, %v1337
    %v1354 = vadd.f32 %v1265, %v1338
    %v1355 = vpack.c.bf16 %v1340, %v1339
    %v1356 = vpack.c.bf16 %v1342, %v1341
    %v1357 = vpack.c.bf16 %v1344, %v1343
    %v1358 = vpack.c.bf16 %v1346, %v1345
    %v1359 = vpack.c.bf16 %v1348, %v1347
    %v1360 = vpack.c.bf16 %v1350, %v1349
    %v1361 = vpack.c.bf16 %v1352, %v1351
    %v1362 = vpack.c.bf16 %v1354, %v1353
    %v1363 = vld [vmem:[#allocation5] sm:$0xff]
    %v1364 = vld [vmem:[#allocation5 + $0x8] sm:$0xf]
    %v1365 = vld [vmem:[#allocation5 + $0xc] sm:$0xff]
    %v1366 = vld [vmem:[#allocation5 + $0x14] sm:$0xf]
    %v1367 = vld [vmem:[#allocation5 + $0x18] sm:$0xff]
    %v1368 = vld [vmem:[#allocation5 + $0x20] sm:$0xf]
    %v1369 = vld [vmem:[#allocation5 + $0x24] sm:$0xff]
    %v1370 = vld [vmem:[#allocation5 + $0x2c] sm:$0xf]
    %v1371 = vld [vmem:[#allocation5 + $0x30] sm:$0xff]
    %v1372 = vld [vmem:[#allocation5 + $0x38] sm:$0xf]
    %v1373 = vld [vmem:[#allocation5 + $0x3c] sm:$0xff]
    %v1374 = vld [vmem:[#allocation5 + $0x44] sm:$0xf]
    %v1375 = vld [vmem:[#allocation5 + $0x48] sm:$0xff]
    %v1376 = vld [vmem:[#allocation5 + $0x50] sm:$0xf]
    %v1377 = vld [vmem:[#allocation5 + $0x54] sm:$0xff]
    %v1378 = vld [vmem:[#allocation5 + $0x5c] sm:$0xf]
    %v1379 = vld [vmem:[#allocation5 + $0x60] sm:$0xff]
    %v1380 = vld [vmem:[#allocation5 + $0x68] sm:$0xf]
    %v1381 = vld [vmem:[#allocation5 + $0x6c] sm:$0xff]
    %v1382 = vld [vmem:[#allocation5 + $0x74] sm:$0xf]
    %v1383 = vld [vmem:[#allocation5 + $0x78] sm:$0xff]
    %v1384 = vld [vmem:[#allocation5 + $0x80] sm:$0xf]
    %v1385 = vld [vmem:[#allocation5 + $0x84] sm:$0xff]
    %v1386 = vld [vmem:[#allocation5 + $0x8c] sm:$0xf]
    %v1387 = vld [vmem:[#allocation5 + $0x90] sm:$0xff]
    %v1388 = vld [vmem:[#allocation5 + $0x98] sm:$0xf]
    %v1389 = vld [vmem:[#allocation5 + $0x9c] sm:$0xff]
    %v1390 = vld [vmem:[#allocation5 + $0xa4] sm:$0xf]
    %v1391 = vld [vmem:[#allocation5 + $0xa8] sm:$0xff]
    %v1392 = vld [vmem:[#allocation5 + $0xb0] sm:$0xf]
    %v1393 = vld [vmem:[#allocation5 + $0xb4] sm:$0xff]
    %v1394 = vld [vmem:[#allocation5 + $0xbc] sm:$0xf]
    %s1395 = scalar_lea.vmem [#allocation7], 2
    %v1396 = vld [vmem:[%s1395] ss:$4 sm:$0x7]
    %v1398 = vperm.slane %v1396, 0
    %v1399 = vperm.slane %v1396, 1
    %v1400 = vperm.slane %v1396, 2
    %v1436 = vunpack.c.l.b16 %v1363
    %v1437 = vunpack.c.h.b16 %v1363
    %v1438 = vunpack.c.l.b16 %v1364
    %v1439 = vunpack.c.l.b16 %v1365
    %v1440 = vunpack.c.h.b16 %v1365
    %v1441 = vunpack.c.l.b16 %v1366
    %v1442 = vunpack.c.l.b16 %v1367
    %v1443 = vunpack.c.h.b16 %v1367
    %v1444 = vunpack.c.l.b16 %v1368
    %v1445 = vunpack.c.l.b16 %v1369
    %v1446 = vunpack.c.h.b16 %v1369
    %v1447 = vunpack.c.l.b16 %v1370
    %v1448 = vunpack.c.l.b16 %v1371
    %v1449 = vunpack.c.h.b16 %v1371
    %v1450 = vunpack.c.l.b16 %v1372
    %v1451 = vunpack.c.l.b16 %v1373
    %v1452 = vunpack.c.h.b16 %v1373
    %v1453 = vunpack.c.l.b16 %v1374
    %v1454 = vunpack.c.l.b16 %v1375
    %v1455 = vunpack.c.h.b16 %v1375
    %v1456 = vunpack.c.l.b16 %v1376
    %v1457 = vunpack.c.l.b16 %v1377
    %v1458 = vunpack.c.h.b16 %v1377
    %v1459 = vunpack.c.l.b16 %v1378
    %v1460 = vunpack.c.l.b16 %v1379
    %v1461 = vunpack.c.h.b16 %v1379
    %v1462 = vunpack.c.l.b16 %v1380
    %v1463 = vunpack.c.l.b16 %v1381
    %v1464 = vunpack.c.h.b16 %v1381
    %v1465 = vunpack.c.l.b16 %v1382
    %v1466 = vunpack.c.l.b16 %v1383
    %v1467 = vunpack.c.h.b16 %v1383
    %v1468 = vunpack.c.l.b16 %v1384
    %v1469 = vunpack.c.l.b16 %v1385
    %v1470 = vunpack.c.h.b16 %v1385
    %v1471 = vunpack.c.l.b16 %v1386
    %v1472 = vunpack.c.l.b16 %v1387
    %v1473 = vunpack.c.h.b16 %v1387
    %v1474 = vunpack.c.l.b16 %v1388
    %v1475 = vunpack.c.l.b16 %v1389
    %v1476 = vunpack.c.h.b16 %v1389
    %v1477 = vunpack.c.l.b16 %v1390
    %v1478 = vunpack.c.l.b16 %v1391
    %v1479 = vunpack.c.h.b16 %v1391
    %v1480 = vunpack.c.l.b16 %v1392
    %v1481 = vunpack.c.l.b16 %v1393
    %v1482 = vunpack.c.h.b16 %v1393
    %v1483 = vunpack.c.l.b16 %v1394
    %v1484 = vpack.c.b16 %v1439, %v1436
    %v1485 = vpack.c.b16 %v1440, %v1437
    %v1486 = vpack.c.b16 %v1441, %v1438
    %v1487 = vpack.c.b16 %v1445, %v1442
    %v1488 = vpack.c.b16 %v1446, %v1443
    %v1489 = vpack.c.b16 %v1447, %v1444
    %v1490 = vpack.c.b16 %v1451, %v1448
    %v1491 = vpack.c.b16 %v1452, %v1449
    %v1492 = vpack.c.b16 %v1453, %v1450
    %v1493 = vpack.c.b16 %v1457, %v1454
    %v1494 = vpack.c.b16 %v1458, %v1455
    %v1495 = vpack.c.b16 %v1459, %v1456
    %v1496 = vpack.c.b16 %v1463, %v1460
    %v1497 = vpack.c.b16 %v1464, %v1461
    %v1498 = vpack.c.b16 %v1465, %v1462
    %v1499 = vpack.c.b16 %v1469, %v1466
    %v1500 = vpack.c.b16 %v1470, %v1467
    %v1501 = vpack.c.b16 %v1471, %v1468
    %v1502 = vpack.c.b16 %v1475, %v1472
    %v1503 = vpack.c.b16 %v1476, %v1473
    %v1504 = vpack.c.b16 %v1477, %v1474
    %v1505 = vpack.c.b16 %v1481, %v1478
    %v1506 = vpack.c.b16 %v1482, %v1479
    %v1507 = vpack.c.b16 %v1483, %v1480
    %1532 = vmatpush.bf16.msra.mxu0 %v1505
    %1533 = vmatpush.bf16.msra.mxu0 %v1502
    %1534 = vmatpush.bf16.msra.mxu0 %v1499
    %1535 = vmatpush.bf16.msra.mxu0 %v1496
    %1536 = vmatpush.bf16.msra.mxu0 %v1493
    %1537 = vmatpush.bf16.msra.mxu0 %v1490
    %1538 = vmatpush.bf16.msra.mxu0 %v1487
    %1539 = vmatpush.bf16.msra.mxu0 %v1484
    %1540 = vmatmul.bf16.gmra.mxu0 %v1355
    %v1541 = vpop.f32.mrf.mxu0
    %v1542 = vadd.f32 %v1398, %v1541
    %v1543 = vpop.f32.mrf.mxu0
    %v1544 = vadd.f32 %v1398, %v1543
    %1545 = vmatmul.bf16.gmra.mxu0 %v1356
    %v1546 = vpop.f32.mrf.mxu0
    %v1547 = vadd.f32 %v1398, %v1546
    %v1548 = vpop.f32.mrf.mxu0
    %v1549 = vadd.f32 %v1398, %v1548
    %1550 = vmatmul.bf16.gmra.mxu0 %v1357
    %v1551 = vpop.f32.mrf.mxu0
    %v1552 = vadd.f32 %v1398, %v1551
    %v1553 = vpop.f32.mrf.mxu0
    %v1554 = vadd.f32 %v1398, %v1553
    %1555 = vmatmul.bf16.gmra.mxu0 %v1358
    %v1556 = vpop.f32.mrf.mxu0
    %v1557 = vadd.f32 %v1398, %v1556
    %v1558 = vpop.f32.mrf.mxu0
    %v1559 = vadd.f32 %v1398, %v1558
    %1560 = vmatmul.bf16.gmra.mxu0 %v1359
    %v1561 = vpop.f32.mrf.mxu0
    %v1562 = vadd.f32 %v1398, %v1561
    %v1563 = vpop.f32.mrf.mxu0
    %v1564 = vadd.f32 %v1398, %v1563
    %1565 = vmatmul.bf16.gmra.mxu0 %v1360
    %v1566 = vpop.f32.mrf.mxu0
    %v1567 = vadd.f32 %v1398, %v1566
    %v1568 = vpop.f32.mrf.mxu0
    %v1569 = vadd.f32 %v1398, %v1568
    %1570 = vmatmul.bf16.gmra.mxu0 %v1361
    %v1571 = vpop.f32.mrf.mxu0
    %v1572 = vadd.f32 %v1398, %v1571
    %v1573 = vpop.f32.mrf.mxu0
    %v1574 = vadd.f32 %v1398, %v1573
    %1575 = vmatmul.bf16.gmra.mxu0 %v1362
    %v1576 = vpop.f32.mrf.mxu0
    %v1577 = vadd.f32 %v1398, %v1576
    %v1578 = vpop.f32.mrf.mxu0
    %v1579 = vadd.f32 %v1398, %v1578
    %1580 = vdwg.mxu0
    %1581 = vmatpush.bf16.msra.mxu0 %v1506
    %1582 = vmatpush.bf16.msra.mxu0 %v1503
    %1583 = vmatpush.bf16.msra.mxu0 %v1500
    %1584 = vmatpush.bf16.msra.mxu0 %v1497
    %1585 = vmatpush.bf16.msra.mxu0 %v1494
    %1586 = vmatpush.bf16.msra.mxu0 %v1491
    %1587 = vmatpush.bf16.msra.mxu0 %v1488
    %1588 = vmatpush.bf16.msra.mxu0 %v1485
    %1589 = vmatmul.bf16.gmra.mxu0 %v1355
    %v1590 = vpop.f32.mrf.mxu0
    %v1591 = vadd.f32 %v1399, %v1590
    %v1592 = vpop.f32.mrf.mxu0
    %v1593 = vadd.f32 %v1399, %v1592
    %1594 = vmatmul.bf16.gmra.mxu0 %v1356
    %v1595 = vpop.f32.mrf.mxu0
    %v1596 = vadd.f32 %v1399, %v1595
    %v1597 = vpop.f32.mrf.mxu0
    %v1598 = vadd.f32 %v1399, %v1597
    %1599 = vmatmul.bf16.gmra.mxu0 %v1357
    %v1600 = vpop.f32.mrf.mxu0
    %v1601 = vadd.f32 %v1399, %v1600
    %v1602 = vpop.f32.mrf.mxu0
    %v1603 = vadd.f32 %v1399, %v1602
    %1604 = vmatmul.bf16.gmra.mxu0 %v1358
    %v1605 = vpop.f32.mrf.mxu0
    %v1606 = vadd.f32 %v1399, %v1605
    %v1607 = vpop.f32.mrf.mxu0
    %v1608 = vadd.f32 %v1399, %v1607
    %1609 = vmatmul.bf16.gmra.mxu0 %v1359
    %v1610 = vpop.f32.mrf.mxu0
    %v1611 = vadd.f32 %v1399, %v1610
    %v1612 = vpop.f32.mrf.mxu0
    %v1613 = vadd.f32 %v1399, %v1612
    %1614 = vmatmul.bf16.gmra.mxu0 %v1360
    %v1615 = vpop.f32.mrf.mxu0
    %v1616 = vadd.f32 %v1399, %v1615
    %v1617 = vpop.f32.mrf.mxu0
    %v1618 = vadd.f32 %v1399, %v1617
    %1619 = vmatmul.bf16.gmra.mxu0 %v1361
    %v1620 = vpop.f32.mrf.mxu0
    %v1621 = vadd.f32 %v1399, %v1620
    %v1622 = vpop.f32.mrf.mxu0
    %v1623 = vadd.f32 %v1399, %v1622
    %1624 = vmatmul.bf16.gmra.mxu0 %v1362
    %v1625 = vpop.f32.mrf.mxu0
    %v1626 = vadd.f32 %v1399, %v1625
    %v1627 = vpop.f32.mrf.mxu0
    %v1628 = vadd.f32 %v1399, %v1627
    %1629 = vdwg.mxu0
    %1630 = vmatpush.bf16.msra.mxu0 %v1507
    %1631 = vmatpush.bf16.msra.mxu0 %v1504
    %1632 = vmatpush.bf16.msra.mxu0 %v1501
    %1633 = vmatpush.bf16.msra.mxu0 %v1498
    %1634 = vmatpush.bf16.msra.mxu0 %v1495
    %1635 = vmatpush.bf16.msra.mxu0 %v1492
    %1636 = vmatpush.bf16.msra.mxu0 %v1489
    %1637 = vmatpush.bf16.msra.mxu0 %v1486
    %1638 = vmatmul.bf16.gmra.mxu0 %v1355
    %v1639 = vpop.f32.mrf.mxu0
    %v1640 = vadd.f32 %v1400, %v1639
    %v1641 = vpop.f32.mrf.mxu0
    %v1642 = vadd.f32 %v1400, %v1641
    %1643 = vmatmul.bf16.gmra.mxu0 %v1356
    %v1644 = vpop.f32.mrf.mxu0
    %v1645 = vadd.f32 %v1400, %v1644
    %v1646 = vpop.f32.mrf.mxu0
    %v1647 = vadd.f32 %v1400, %v1646
    %1648 = vmatmul.bf16.gmra.mxu0 %v1357
    %v1649 = vpop.f32.mrf.mxu0
    %v1650 = vadd.f32 %v1400, %v1649
    %v1651 = vpop.f32.mrf.mxu0
    %v1652 = vadd.f32 %v1400, %v1651
    %1653 = vmatmul.bf16.gmra.mxu0 %v1358
    %v1654 = vpop.f32.mrf.mxu0
    %v1655 = vadd.f32 %v1400, %v1654
    %v1656 = vpop.f32.mrf.mxu0
    %v1657 = vadd.f32 %v1400, %v1656
    %1658 = vmatmul.bf16.gmra.mxu0 %v1359
    %v1659 = vpop.f32.mrf.mxu0
    %v1660 = vadd.f32 %v1400, %v1659
    %v1661 = vpop.f32.mrf.mxu0
    %v1662 = vadd.f32 %v1400, %v1661
    %1663 = vmatmul.bf16.gmra.mxu0 %v1360
    %v1664 = vpop.f32.mrf.mxu0
    %v1665 = vadd.f32 %v1400, %v1664
    %v1666 = vpop.f32.mrf.mxu0
    %v1667 = vadd.f32 %v1400, %v1666
    %1668 = vmatmul.bf16.gmra.mxu0 %v1361
    %v1669 = vpop.f32.mrf.mxu0
    %v1670 = vadd.f32 %v1400, %v1669
    %v1671 = vpop.f32.mrf.mxu0
    %v1672 = vadd.f32 %v1400, %v1671
    %1673 = vmatmul.bf16.gmra.mxu0 %v1362
    %v1674 = vpop.f32.mrf.mxu0
    %v1675 = vadd.f32 %v1400, %v1674
    %v1676 = vpop.f32.mrf.mxu0
    %v1677 = vadd.f32 %v1400, %v1676
    %1678 = vdwg.mxu0
    %v1679 = vpack.c.bf16 %v1593, %v1591
    %v1680 = vpack.c.bf16 %v1598, %v1596
    %v1681 = vpack.c.bf16 %v1603, %v1601
    %v1682 = vpack.c.bf16 %v1608, %v1606
    %v1683 = vpack.c.bf16 %v1613, %v1611
    %v1684 = vpack.c.bf16 %v1618, %v1616
    %v1685 = vpack.c.bf16 %v1623, %v1621
    %v1686 = vpack.c.bf16 %v1628, %v1626
    %1687 = vmatpush.bf16.msra.mxu0 %v1686
    %1688 = vmatpush.bf16.msra.mxu0 %v1685
    %1689 = vmatpush.bf16.msra.mxu0 %v1684
    %1690 = vmatpush.bf16.msra.mxu0 %v1683
    %1691 = vmatpush.bf16.msra.mxu0 %v1682
    %1692 = vmatpush.bf16.msra.mxu0 %v1681
    %1693 = vmatpush.bf16.msra.mxu0 %v1680
    %1694 = vmatpush.bf16.msra.mxu0 %v1679
    %1695 = vmatmul.bf16.gmra.mxu0 %v586
    %v1696 = vpop.f32.mrf.mxu0
    %v1697 = vadd.f32 0.0, %v1696
    %v1698 = vpop.f32.mrf.mxu0
    %v1699 = vadd.f32 0.0, %v1698
    %1700 = vmatmul.bf16.gmra.mxu0 %v587
    %v1701 = vpop.f32.mrf.mxu0
    %v1702 = vadd.f32 0.0, %v1701
    %v1703 = vpop.f32.mrf.mxu0
    %v1704 = vadd.f32 0.0, %v1703
    %1705 = vmatmul.bf16.gmra.mxu0 %v588
    %v1706 = vpop.f32.mrf.mxu0
    %v1707 = vadd.f32 0.0, %v1706
    %v1708 = vpop.f32.mrf.mxu0
    %v1709 = vadd.f32 0.0, %v1708
    %1710 = vmatmul.bf16.gmra.mxu0 %v589
    %v1711 = vpop.f32.mrf.mxu0
    %v1712 = vadd.f32 0.0, %v1711
    %v1713 = vpop.f32.mrf.mxu0
    %v1714 = vadd.f32 0.0, %v1713
    %1715 = vmatmul.bf16.gmra.mxu0 %v590
    %v1716 = vpop.f32.mrf.mxu0
    %v1717 = vadd.f32 0.0, %v1716
    %v1718 = vpop.f32.mrf.mxu0
    %v1719 = vadd.f32 0.0, %v1718
    %1720 = vmatmul.bf16.gmra.mxu0 %v591
    %v1721 = vpop.f32.mrf.mxu0
    %v1722 = vadd.f32 0.0, %v1721
    %v1723 = vpop.f32.mrf.mxu0
    %v1724 = vadd.f32 0.0, %v1723
    %1725 = vmatmul.bf16.gmra.mxu0 %v592
    %v1726 = vpop.f32.mrf.mxu0
    %v1727 = vadd.f32 0.0, %v1726
    %v1728 = vpop.f32.mrf.mxu0
    %v1729 = vadd.f32 0.0, %v1728
    %1730 = vmatmul.bf16.gmra.mxu0 %v593
    %v1731 = vpop.f32.mrf.mxu0
    %v1732 = vadd.f32 0.0, %v1731
    %v1733 = vpop.f32.mrf.mxu0
    %v1734 = vadd.f32 0.0, %v1733
    %1735 = vdwg.mxu0
    %v1736 = vadd.f32 %v1542, %v1697
    %v1737 = vadd.f32 %v1544, %v1699
    %v1738 = vadd.f32 %v1547, %v1702
    %v1739 = vadd.f32 %v1549, %v1704
    %v1740 = vadd.f32 %v1552, %v1707
    %v1741 = vadd.f32 %v1554, %v1709
    %v1742 = vadd.f32 %v1557, %v1712
    %v1743 = vadd.f32 %v1559, %v1714
    %v1744 = vadd.f32 %v1562, %v1717
    %v1745 = vadd.f32 %v1564, %v1719
    %v1746 = vadd.f32 %v1567, %v1722
    %v1747 = vadd.f32 %v1569, %v1724
    %v1748 = vadd.f32 %v1572, %v1727
    %v1749 = vadd.f32 %v1574, %v1729
    %v1750 = vadd.f32 %v1577, %v1732
    %v1751 = vadd.f32 %v1579, %v1734
    %v1752 = vpack.c.bf16 %v1642, %v1640
    %v1753 = vpack.c.bf16 %v1647, %v1645
    %v1754 = vpack.c.bf16 %v1652, %v1650
    %v1755 = vpack.c.bf16 %v1657, %v1655
    %v1756 = vpack.c.bf16 %v1662, %v1660
    %v1757 = vpack.c.bf16 %v1667, %v1665
    %v1758 = vpack.c.bf16 %v1672, %v1670
    %v1759 = vpack.c.bf16 %v1677, %v1675
    %1760 = vmatpush.bf16.msra.mxu0 %v1759
    %1761 = vmatpush.bf16.msra.mxu0 %v1758
    %1762 = vmatpush.bf16.msra.mxu0 %v1757
    %1763 = vmatpush.bf16.msra.mxu0 %v1756
    %1764 = vmatpush.bf16.msra.mxu0 %v1755
    %1765 = vmatpush.bf16.msra.mxu0 %v1754
    %1766 = vmatpush.bf16.msra.mxu0 %v1753
    %1767 = vmatpush.bf16.msra.mxu0 %v1752
    %1768 = vmatmul.bf16.gmra.mxu0 %v740
    %v1769 = vpop.f32.mrf.mxu0
    %v1770 = vadd.f32 0.0, %v1769
    %v1771 = vpop.f32.mrf.mxu0
    %v1772 = vadd.f32 0.0, %v1771
    %1773 = vmatmul.bf16.gmra.mxu0 %v741
    %v1774 = vpop.f32.mrf.mxu0
    %v1775 = vadd.f32 0.0, %v1774
    %v1776 = vpop.f32.mrf.mxu0
    %v1777 = vadd.f32 0.0, %v1776
    %1778 = vmatmul.bf16.gmra.mxu0 %v742
    %v1779 = vpop.f32.mrf.mxu0
    %v1780 = vadd.f32 0.0, %v1779
    %v1781 = vpop.f32.mrf.mxu0
    %v1782 = vadd.f32 0.0, %v1781
    %1783 = vmatmul.bf16.gmra.mxu0 %v743
    %v1784 = vpop.f32.mrf.mxu0
    %v1785 = vadd.f32 0.0, %v1784
    %v1786 = vpop.f32.mrf.mxu0
    %v1787 = vadd.f32 0.0, %v1786
    %1788 = vmatmul.bf16.gmra.mxu0 %v744
    %v1789 = vpop.f32.mrf.mxu0
    %v1790 = vadd.f32 0.0, %v1789
    %v1791 = vpop.f32.mrf.mxu0
    %v1792 = vadd.f32 0.0, %v1791
    %1793 = vmatmul.bf16.gmra.mxu0 %v745
    %v1794 = vpop.f32.mrf.mxu0
    %v1795 = vadd.f32 0.0, %v1794
    %v1796 = vpop.f32.mrf.mxu0
    %v1797 = vadd.f32 0.0, %v1796
    %1798 = vmatmul.bf16.gmra.mxu0 %v746
    %v1799 = vpop.f32.mrf.mxu0
    %v1800 = vadd.f32 0.0, %v1799
    %v1801 = vpop.f32.mrf.mxu0
    %v1802 = vadd.f32 0.0, %v1801
    %1803 = vmatmul.bf16.gmra.mxu0 %v747
    %v1804 = vpop.f32.mrf.mxu0
    %v1805 = vadd.f32 0.0, %v1804
    %v1806 = vpop.f32.mrf.mxu0
    %v1807 = vadd.f32 0.0, %v1806
    %1808 = vdwg.mxu0
    %v1809 = vadd.f32 %v1736, %v1770
    %v1810 = vadd.f32 %v1737, %v1772
    %v1811 = vadd.f32 %v1738, %v1775
    %v1812 = vadd.f32 %v1739, %v1777
    %v1813 = vadd.f32 %v1740, %v1780
    %v1814 = vadd.f32 %v1741, %v1782
    %v1815 = vadd.f32 %v1742, %v1785
    %v1816 = vadd.f32 %v1743, %v1787
    %v1817 = vadd.f32 %v1744, %v1790
    %v1818 = vadd.f32 %v1745, %v1792
    %v1819 = vadd.f32 %v1746, %v1795
    %v1820 = vadd.f32 %v1747, %v1797
    %v1821 = vadd.f32 %v1748, %v1800
    %v1822 = vadd.f32 %v1749, %v1802
    %v1823 = vadd.f32 %v1750, %v1805
    %v1824 = vadd.f32 %v1751, %v1807
    %1825 = vst [vmem:[#allocation8] sm:$0xff] %v1809
    %1826 = vst [vmem:[#allocation8 + $0x8] sm:$0xff] %v1810
    %1827 = vst [vmem:[#allocation8 + $0x10] sm:$0xff] %v1811
    %1828 = vst [vmem:[#allocation8 + $0x18] sm:$0xff] %v1812
    %1829 = vst [vmem:[#allocation8 + $0x20] sm:$0xff] %v1813
    %1830 = vst [vmem:[#allocation8 + $0x28] sm:$0xff] %v1814
    %1831 = vst [vmem:[#allocation8 + $0x30] sm:$0xff] %v1815
    %1832 = vst [vmem:[#allocation8 + $0x38] sm:$0xff] %v1816
    %1833 = vst [vmem:[#allocation8 + $0x40] sm:$0xff] %v1817
    %1834 = vst [vmem:[#allocation8 + $0x48] sm:$0xff] %v1818
    %1835 = vst [vmem:[#allocation8 + $0x50] sm:$0xff] %v1819
    %1836 = vst [vmem:[#allocation8 + $0x58] sm:$0xff] %v1820
    %1837 = vst [vmem:[#allocation8 + $0x60] sm:$0xff] %v1821
    %1838 = vst [vmem:[#allocation8 + $0x68] sm:$0xff] %v1822
    %1839 = vst [vmem:[#allocation8 + $0x70] sm:$0xff] %v1823
    %1840 = vst [vmem:[#allocation8 + $0x78] sm:$0xff] %v1824
    // Predicated region
    $region38: #{tpu_custom_call.1} parent=1 // pred_check
      _
    $region39: #{tpu_custom_call.1} parent=1 // pred_check_branch
      %1842 = sbr.rel (0) target = $region41
    $region40: #{tpu_custom_call.1} parent=1 // pred_region
      %1844 = vsyncadd [#allocation4], 0
      %s1845 = sshll.u32 [#allocation8], 4
      %s1846 = int_to_ptr.vmem [resolvable:$true] %s1845
      %s1847 = sshll.u32 %s6, 4
      %s1848 = int_to_ptr.hbm [resolvable:$true] %s1847
      %1853 = dma.vmem_to_hbm [thread:$0]  %s1846, 2048, %s1848, [#allocation4], 128, 128, 8
    $region41: #{tpu_custom_call.1} parent=1 // pred_fallthru
      _
    // Predicated region
    $region42: #{tpu_custom_call.1} parent=1 // pred_check
      _
    $region43: #{tpu_custom_call.1} parent=1 // pred_check_branch
      %1855 = sbr.rel (0) target = $region45
    $region44: #{tpu_custom_call.1} parent=1 // pred_region
      %1857 = dma.done [#allocation4], 2048
    $region45: #{tpu_custom_call.1} parent=1 // pred_fallthru
      _
    %1858 = vsyncpa [#allocation3], 1
    %1859 = vsyncpa [#allocation6], 1
    %1860 = vsyncpa [#allocation4], 1

</llo_original>
